<compile_context>
chip_gen: v7x
topology: tpu7x:2x2x1
jax: 0.10.0
libtpu: 0.0.40
codegen_flags: <defaults>
</compile_context>

<pallas_src>
import functools

import jax
import jax.numpy as jnp
from jax.experimental import pallas as pl
from jax.experimental.pallas import tpu as pltpu


_NEG = -1e30  # bias for padded output lanes -> exp() underflows to 0 in softmax


def _round_up(n, m):
    return (n + m - 1) // m * m


def rnn_rollout_kernel(x_ref, h0_ref, w_ih_ref, bz_ref, w_hh_h_ref, w_hh_o_ref,
                       w2_ref, b2_ref, out_ref, hid_ref, xproj_ref, hall_ref,
                       *, T, BP, HP, B):
    """Whole-sequence rollout in one invocation (everything VMEM-resident)."""
    # ---- Prologue (batched over T*BP rows): input half of the fused
    #      [hid | lin1] projection, bias folded in exactly once. -------------
    xproj_ref[...] = (
        jnp.dot(x_ref[...], w_ih_ref[...], preferred_element_type=jnp.float32)
        + bz_ref[...])

    # ---- Recurrence: only h @ W_hh_hid stays on the serial critical path. --
    w_hh_h = w_hh_h_ref[...]                       # hoisted, loaded once
    h = h0_ref[...]                                # f32 [BP, HP]
    for t in range(T):                             # T static -> fully unrolled
        hall_ref[t * BP:(t + 1) * BP, :] = h       # hidden entering step t
        h = (xproj_ref[t * BP:(t + 1) * BP, :HP]
             + jnp.dot(h.astype(w_hh_h.dtype), w_hh_h,
                       preferred_element_type=jnp.float32))

    # Zero padded batch rows (they only ever see bias) before writing out.
    row = jax.lax.broadcasted_iota(jnp.int32, (BP, 1), 0)
    hid_ref[...] = jnp.where(row < B, h, 0.0)

    # ---- Epilogue (batched over T*BP rows): lin1 hidden half, lin2,
    #      log-softmax.  All off the sequential chain. ------------------------
    o1 = (xproj_ref[:, HP:]
          + jnp.dot(hall_ref[...].astype(w_hh_o_ref.dtype), w_hh_o_ref[...],
                    preferred_element_type=jnp.float32))
    # dropout1 (p=0.2) / dropout2 (p=0.3): identity in eval mode.
    # TODO(synk): training-mode dropout with PyTorch RNG semantics not reproduced.
    o2 = (jnp.dot(o1.astype(w2_ref.dtype), w2_ref[...],
                  preferred_element_type=jnp.float32)
          + b2_ref[...])                           # pad lanes carry -1e30 bias
    m = jnp.max(o2, axis=1, keepdims=True)
    s = o2 - m
    lse = jnp.log(jnp.sum(jnp.exp(s), axis=1, keepdims=True))
    out_ref[...] = s - lse


def pack_params(params, input_size, hidden_size, output_size,
                compute_dtype=jnp.bfloat16):
    """Pad / split / fuse PyTorch-style params into the kernel layout."""
    w_hid, b_hid, w1, b1, w2, b2 = params
    I, H, O = input_size, hidden_size, output_size
    IP, HP, OP = _round_up(I, 128), _round_up(H, 128), _round_up(O, 128)
    f32 = jnp.float32

    # Fused [hid | lin1] weight, input-feature rows (used in the prologue).
    w_ih = jnp.zeros((IP, HP + OP), f32)
    w_ih = w_ih.at[:I, :H].set(w_hid[:I])
    w_ih = w_ih.at[:I, HP:HP + O].set(w1[:I])

    # Hidden-feature rows, split so only the `hid` half sits in the time loop.
    w_hh_hid = jnp.zeros((HP, HP), f32).at[:H, :H].set(w_hid[I:])
    w_hh_o1 = jnp.zeros((HP, OP), f32).at[:H, :O].set(w1[I:])

    b_z = jnp.zeros((1, HP + OP), f32)
    b_z = b_z.at[0, :H].set(b_hid[0])
    b_z = b_z.at[0, HP:HP + O].set(b1[0])

    w2p = jnp.zeros((OP, OP), f32).at[:O, :O].set(w2)
    b2p = jnp.full((1, OP), _NEG, f32).at[0, :O].set(b2[0])  # stays f32

    cd = compute_dtype
    return dict(w_ih=w_ih.astype(cd), w_hh_hid=w_hh_hid.astype(cd),
                w_hh_o1=w_hh_o1.astype(cd), w2=w2p.astype(cd),
                b_z=b_z, b2=b2p, compute_dtype=cd,
                I=I, H=H, O=O, IP=IP, HP=HP, OP=OP)


def network_forward_seq(xs, h0, packed):
    """Roll the RNN cell over a sequence in one pallas_call.

    xs: [T, B, input_size], h0: [B, hidden_size]
    returns (log_probs [T, B, output_size], final_hidden [B, hidden_size]).
    """
    T, B, I = xs.shape
    H, O = packed["H"], packed["O"]
    IP, HP, OP = packed["IP"], packed["HP"], packed["OP"]
    cd = packed["compute_dtype"]
    BP = max(8, _round_up(B, 8))
    f32 = jnp.float32

    xs_p = jnp.zeros((T, BP, IP), cd).at[:, :B, :I].set(xs.astype(cd))
    xs_flat = xs_p.reshape(T * BP, IP)            # free reshape on the host side
    h0_p = jnp.zeros((BP, HP), f32).at[:B, :H].set(h0)

    def full(shape):
        return pl.BlockSpec(shape, lambda i, _n=len(shape): (0,) * _n)

    kernel = functools.partial(rnn_rollout_kernel, T=T, BP=BP, HP=HP, B=B)
    out_flat, hid_p = pl.pallas_call(
        kernel,
        out_shape=(
            jax.ShapeDtypeStruct((T * BP, OP), f32),
            jax.ShapeDtypeStruct((BP, HP), f32),
        ),
        grid=(1,),
        in_specs=[
            full((T * BP, IP)),      # xs (flattened, bf16)
            full((BP, HP)),          # h0 (f32)
            full((IP, HP + OP)),     # W_ih fused [hid|lin1]  (bf16)
            full((1, HP + OP)),      # b fused                (f32)
            full((HP, HP)),          # W_hh hid half          (bf16)
            full((HP, OP)),          # W_hh lin1 half         (bf16)
            full((OP, OP)),          # W2                     (bf16)
            full((1, OP)),           # b2 (-1e30 pads)        (f32)
        ],
        out_specs=(
            full((T * BP, OP)),      # log-probs, lane-dense
            full((BP, HP)),          # final hidden
        ),
        scratch_shapes=[
            pltpu.VMEM((T * BP, HP + OP), jnp.float32),   # Xproj
            pltpu.VMEM((T * BP, HP), jnp.float32),        # hidden entering each step
        ],
        compiler_params=pltpu.CompilerParams(
            dimension_semantics=("arbitrary",)),
    )(xs_flat, h0_p, packed["w_ih"], packed["b_z"], packed["w_hh_hid"],
      packed["w_hh_o1"], packed["w2"], packed["b2"])

    out = out_flat.reshape(T, BP, OP)[:, :B, :O]
    return out, hid_p[:B, :H]


def network_forward(inp, hidden, packed):
    """Single-step forward matching PyTorch Network.forward(input, hidden)."""
    out_seq, h1 = network_forward_seq(inp[None], hidden, packed)
    return out_seq[0], h1


def init_params(key, input_size, hidden_size, output_size):
    """PyTorch-style Linear init (uniform +/- 1/sqrt(fan_in)).

    Weights stored transposed: (in_features, out_features); biases (1, out).
    """
    def linear(key, fan_in, fan_out):
        k_w, k_b = jax.random.split(key)
        bound = 1.0 / jnp.sqrt(fan_in)
        w = jax.random.uniform(k_w, (fan_in, fan_out), jnp.float32, -bound, bound)
        b = jax.random.uniform(k_b, (1, fan_out), jnp.float32, -bound, bound)
        return w, b

    k1, k2, k3 = jax.random.split(key, 3)
    combined = input_size + hidden_size
    w_hid, b_hid = linear(k1, combined, hidden_size)
    w1, b1 = linear(k2, combined, output_size)
    w2, b2 = linear(k3, output_size, output_size)
    return (w_hid, b_hid, w1, b1, w2, b2)


def _reference_step(inp, hidden, params):
    """Pure-JAX f32 reference of the PyTorch forward (eval mode)."""
    w_hid, b_hid, w1, b1, w2, b2 = params
    hi = jax.lax.Precision.HIGHEST
    combined = jnp.concatenate([inp, hidden], axis=1)
    new_hidden = jnp.dot(combined, w_hid, precision=hi) + b_hid
    o = jnp.dot(combined, w1, precision=hi) + b1
    o = jnp.dot(o, w2, precision=hi) + b2
    return jax.nn.log_softmax(o, axis=1), new_hidden


if __name__ == "__main__":
    input_size, hidden_size, output_size = 16, 32, 8
    batch, seq_len = 2, 8

    key = jax.random.PRNGKey(0)
    k_params, k_in = jax.random.split(key)
    params = init_params(k_params, input_size, hidden_size, output_size)
    packed = pack_params(params, input_size, hidden_size, output_size)

    xs = jax.random.normal(k_in, (seq_len, batch, input_size), jnp.float32)
    h0 = jnp.zeros((batch, hidden_size), jnp.float32)  # init_hidden per batch row

    # Full-sequence rollout (one pallas_call, whole sequence resident in VMEM).
    out_seq, h_final = network_forward_seq(xs, h0, packed)
    jax.block_until_ready((out_seq, h_final))

    # Pure-JAX per-step f32 reference for the same rollout.
    ref_outs = []
    h_ref = h0
    for t in range(seq_len):
        o_t, h_ref = _reference_step(xs[t], h_ref, params)
        ref_outs.append(o_t)
    ref_out_seq = jnp.stack(ref_outs, axis=0)

    assert out_seq.shape == (seq_len, batch, output_size)
    assert h_final.shape == (batch, hidden_size)
    # bf16 MXU operands vs. f32 HIGHEST reference -> 2e-2 tolerance.
    assert jnp.allclose(out_seq, ref_out_seq, atol=2e-2, rtol=2e-2), (
        jnp.max(jnp.abs(out_seq - ref_out_seq)))
    assert jnp.allclose(h_final, h_ref, atol=2e-2, rtol=2e-2), (
        jnp.max(jnp.abs(h_final - h_ref)))

    # Single-step API matches the PyTorch forward(input, hidden) semantics.
    out1, h1 = network_forward(xs[0], h0, packed)
    ref_out1, ref_h1 = _reference_step(xs[0], h0, params)
    jax.block_until_ready((out1, h1))
    assert jnp.allclose(out1, ref_out1, atol=2e-2, rtol=2e-2)
    assert jnp.allclose(h1, ref_h1, atol=2e-2, rtol=2e-2)

    # log-softmax rows sum to 1 in prob space.
    probs = jnp.exp(out_seq).sum(axis=-1)
    assert jnp.allclose(probs, 1.0, atol=1e-4), probs

    print("KERNEL_OK")
</pallas_src>

<mosaic_0001>
module attributes {stable_mosaic.version = 11 : i64} {
  func.func @rnn_rollout_kernel(%arg0: i32, %arg1: memref<64x128xbf16, #tpu.memory_space<vmem>>, %arg2: memref<8x128xf32, #tpu.memory_space<vmem>>, %arg3: memref<128x256xbf16, #tpu.memory_space<vmem>>, %arg4: memref<1x256xf32, #tpu.memory_space<vmem>>, %arg5: memref<128x128xbf16, #tpu.memory_space<vmem>>, %arg6: memref<128x128xbf16, #tpu.memory_space<vmem>>, %arg7: memref<128x128xbf16, #tpu.memory_space<vmem>>, %arg8: memref<1x128xf32, #tpu.memory_space<vmem>>, %arg9: memref<64x128xf32, #tpu.memory_space<vmem>>, %arg10: memref<8x128xf32, #tpu.memory_space<vmem>>, %arg11: memref<64x256xf32, #tpu.memory_space<vmem>>, %arg12: memref<64x128xf32, #tpu.memory_space<vmem>>) attributes {dimension_semantics = [#tpu.dimension_semantics<arbitrary>], iteration_bounds = array<i64: 1>, scalar_prefetch = 0 : i64, scratch_operands = 2 : i64, tpu.core_type = #tpu.core_type<tc>, window_params = [{pipeline_mode = #tpu.pipeline_mode<synchronous>, transform_indices = @transform_0, window_bounds = array<i64: 64, 128>}, {pipeline_mode = #tpu.pipeline_mode<synchronous>, transform_indices = @transform_1, window_bounds = array<i64: 8, 128>}, {pipeline_mode = #tpu.pipeline_mode<synchronous>, transform_indices = @transform_2, window_bounds = array<i64: 128, 256>}, {pipeline_mode = #tpu.pipeline_mode<synchronous>, transform_indices = @transform_3, window_bounds = array<i64: 1, 256>}, {pipeline_mode = #tpu.pipeline_mode<synchronous>, transform_indices = @transform_4, window_bounds = array<i64: 128, 128>}, {pipeline_mode = #tpu.pipeline_mode<synchronous>, transform_indices = @transform_5, window_bounds = array<i64: 128, 128>}, {pipeline_mode = #tpu.pipeline_mode<synchronous>, transform_indices = @transform_6, window_bounds = array<i64: 128, 128>}, {pipeline_mode = #tpu.pipeline_mode<synchronous>, transform_indices = @transform_7, window_bounds = array<i64: 1, 128>}, {pipeline_mode = #tpu.pipeline_mode<synchronous>, transform_indices = @transform_8, window_bounds = array<i64: 64, 128>}, {pipeline_mode = #tpu.pipeline_mode<synchronous>, transform_indices = @transform_9, window_bounds = array<i64: 8, 128>}]} {
    %c0 = arith.constant 0 : index
    %c0_0 = arith.constant 0 : index
    %0 = vector.load %arg1[%c0, %c0_0] : memref<64x128xbf16, #tpu.memory_space<vmem>>, vector<64x128xbf16>
    %c0_1 = arith.constant 0 : index
    %c0_2 = arith.constant 0 : index
    %1 = vector.load %arg3[%c0_1, %c0_2] : memref<128x256xbf16, #tpu.memory_space<vmem>>, vector<128x256xbf16>
    %cst = arith.constant dense<0.000000e+00> : vector<64x256xf32>
    %2 = tpu.matmul %0, %1, %cst {dimension_numbers = #tpu.dot_dimension_numbers<[1], [0], [0], [1], [0, 0, 1, 1], [], []>} : vector<64x128xbf16>, vector<128x256xbf16>, vector<64x256xf32> -> vector<64x256xf32>
    %c0_3 = arith.constant 0 : index
    %c0_4 = arith.constant 0 : index
    %3 = vector.load %arg4[%c0_3, %c0_4] : memref<1x256xf32, #tpu.memory_space<vmem>>, vector<1x256xf32>
    %4 = vector.broadcast %3 : vector<1x256xf32> to vector<64x256xf32>
    %5 = arith.addf %2, %4 : vector<64x256xf32>
    %c0_5 = arith.constant 0 : index
    %c0_6 = arith.constant 0 : index
    %6 = vector.load %arg11[%c0_5, %c0_6] : memref<64x256xf32, #tpu.memory_space<vmem>>, vector<64x256xf32>
    tpu.vector_store %arg11[%c0_5, %c0_6], %5 {strides = array<i32>} : memref<64x256xf32, #tpu.memory_space<vmem>>, vector<64x256xf32>,
    %c0_7 = arith.constant 0 : index
    %c0_8 = arith.constant 0 : index
    %7 = vector.load %arg5[%c0_7, %c0_8] : memref<128x128xbf16, #tpu.memory_space<vmem>>, vector<128x128xbf16>
    %c0_9 = arith.constant 0 : index
    %c0_10 = arith.constant 0 : index
    %8 = vector.load %arg2[%c0_9, %c0_10] : memref<8x128xf32, #tpu.memory_space<vmem>>, vector<8x128xf32>
    %c0_11 = arith.constant 0 : index
    %c0_12 = arith.constant 0 : index
    %9 = vector.load %arg12[%c0_11, %c0_12] : memref<64x128xf32, #tpu.memory_space<vmem>>, vector<8x128xf32>
    tpu.vector_store %arg12[%c0_11, %c0_12], %8 {strides = array<i32>} : memref<64x128xf32, #tpu.memory_space<vmem>>, vector<8x128xf32>,
    %c0_13 = arith.constant 0 : index
    %c0_14 = arith.constant 0 : index
    %10 = vector.load %arg11[%c0_13, %c0_14] : memref<64x256xf32, #tpu.memory_space<vmem>>, vector<8x128xf32>
    %11 = arith.truncf %8 : vector<8x128xf32> to vector<8x128xbf16>
    %cst_15 = arith.constant dense<0.000000e+00> : vector<8x128xf32>
    %12 = tpu.matmul %11, %7, %cst_15 {dimension_numbers = #tpu.dot_dimension_numbers<[1], [0], [0], [1], [0, 0, 1, 1], [], []>} : vector<8x128xbf16>, vector<128x128xbf16>, vector<8x128xf32> -> vector<8x128xf32>
    %13 = arith.addf %10, %12 : vector<8x128xf32>
    %c8 = arith.constant 8 : index
    %c0_16 = arith.constant 0 : index
    %14 = vector.load %arg12[%c8, %c0_16] : memref<64x128xf32, #tpu.memory_space<vmem>>, vector<8x128xf32>
    tpu.vector_store %arg12[%c8, %c0_16], %13 {strides = array<i32>} : memref<64x128xf32, #tpu.memory_space<vmem>>, vector<8x128xf32>,
    %c8_17 = arith.constant 8 : index
    %c0_18 = arith.constant 0 : index
    %15 = vector.load %arg11[%c8_17, %c0_18] : memref<64x256xf32, #tpu.memory_space<vmem>>, vector<8x128xf32>
    %16 = arith.truncf %13 : vector<8x128xf32> to vector<8x128xbf16>
    %cst_19 = arith.constant dense<0.000000e+00> : vector<8x128xf32>
    %17 = tpu.matmul %16, %7, %cst_19 {dimension_numbers = #tpu.dot_dimension_numbers<[1], [0], [0], [1], [0, 0, 1, 1], [], []>} : vector<8x128xbf16>, vector<128x128xbf16>, vector<8x128xf32> -> vector<8x128xf32>
    %18 = arith.addf %15, %17 : vector<8x128xf32>
    %c16 = arith.constant 16 : index
    %c0_20 = arith.constant 0 : index
    %19 = vector.load %arg12[%c16, %c0_20] : memref<64x128xf32, #tpu.memory_space<vmem>>, vector<8x128xf32>
    tpu.vector_store %arg12[%c16, %c0_20], %18 {strides = array<i32>} : memref<64x128xf32, #tpu.memory_space<vmem>>, vector<8x128xf32>,
    %c16_21 = arith.constant 16 : index
    %c0_22 = arith.constant 0 : index
    %20 = vector.load %arg11[%c16_21, %c0_22] : memref<64x256xf32, #tpu.memory_space<vmem>>, vector<8x128xf32>
    %21 = arith.truncf %18 : vector<8x128xf32> to vector<8x128xbf16>
    %cst_23 = arith.constant dense<0.000000e+00> : vector<8x128xf32>
    %22 = tpu.matmul %21, %7, %cst_23 {dimension_numbers = #tpu.dot_dimension_numbers<[1], [0], [0], [1], [0, 0, 1, 1], [], []>} : vector<8x128xbf16>, vector<128x128xbf16>, vector<8x128xf32> -> vector<8x128xf32>
    %23 = arith.addf %20, %22 : vector<8x128xf32>
    %c24 = arith.constant 24 : index
    %c0_24 = arith.constant 0 : index
    %24 = vector.load %arg12[%c24, %c0_24] : memref<64x128xf32, #tpu.memory_space<vmem>>, vector<8x128xf32>
    tpu.vector_store %arg12[%c24, %c0_24], %23 {strides = array<i32>} : memref<64x128xf32, #tpu.memory_space<vmem>>, vector<8x128xf32>,
    %c24_25 = arith.constant 24 : index
    %c0_26 = arith.constant 0 : index
    %25 = vector.load %arg11[%c24_25, %c0_26] : memref<64x256xf32, #tpu.memory_space<vmem>>, vector<8x128xf32>
    %26 = arith.truncf %23 : vector<8x128xf32> to vector<8x128xbf16>
    %cst_27 = arith.constant dense<0.000000e+00> : vector<8x128xf32>
    %27 = tpu.matmul %26, %7, %cst_27 {dimension_numbers = #tpu.dot_dimension_numbers<[1], [0], [0], [1], [0, 0, 1, 1], [], []>} : vector<8x128xbf16>, vector<128x128xbf16>, vector<8x128xf32> -> vector<8x128xf32>
    %28 = arith.addf %25, %27 : vector<8x128xf32>
    %c32 = arith.constant 32 : index
    %c0_28 = arith.constant 0 : index
    %29 = vector.load %arg12[%c32, %c0_28] : memref<64x128xf32, #tpu.memory_space<vmem>>, vector<8x128xf32>
    tpu.vector_store %arg12[%c32, %c0_28], %28 {strides = array<i32>} : memref<64x128xf32, #tpu.memory_space<vmem>>, vector<8x128xf32>,
    %c32_29 = arith.constant 32 : index
    %c0_30 = arith.constant 0 : index
    %30 = vector.load %arg11[%c32_29, %c0_30] : memref<64x256xf32, #tpu.memory_space<vmem>>, vector<8x128xf32>
    %31 = arith.truncf %28 : vector<8x128xf32> to vector<8x128xbf16>
    %cst_31 = arith.constant dense<0.000000e+00> : vector<8x128xf32>
    %32 = tpu.matmul %31, %7, %cst_31 {dimension_numbers = #tpu.dot_dimension_numbers<[1], [0], [0], [1], [0, 0, 1, 1], [], []>} : vector<8x128xbf16>, vector<128x128xbf16>, vector<8x128xf32> -> vector<8x128xf32>
    %33 = arith.addf %30, %32 : vector<8x128xf32>
    %c40 = arith.constant 40 : index
    %c0_32 = arith.constant 0 : index
    %34 = vector.load %arg12[%c40, %c0_32] : memref<64x128xf32, #tpu.memory_space<vmem>>, vector<8x128xf32>
    tpu.vector_store %arg12[%c40, %c0_32], %33 {strides = array<i32>} : memref<64x128xf32, #tpu.memory_space<vmem>>, vector<8x128xf32>,
    %c40_33 = arith.constant 40 : index
    %c0_34 = arith.constant 0 : index
    %35 = vector.load %arg11[%c40_33, %c0_34] : memref<64x256xf32, #tpu.memory_space<vmem>>, vector<8x128xf32>
    %36 = arith.truncf %33 : vector<8x128xf32> to vector<8x128xbf16>
    %cst_35 = arith.constant dense<0.000000e+00> : vector<8x128xf32>
    %37 = tpu.matmul %36, %7, %cst_35 {dimension_numbers = #tpu.dot_dimension_numbers<[1], [0], [0], [1], [0, 0, 1, 1], [], []>} : vector<8x128xbf16>, vector<128x128xbf16>, vector<8x128xf32> -> vector<8x128xf32>
    %38 = arith.addf %35, %37 : vector<8x128xf32>
    %c48 = arith.constant 48 : index
    %c0_36 = arith.constant 0 : index
    %39 = vector.load %arg12[%c48, %c0_36] : memref<64x128xf32, #tpu.memory_space<vmem>>, vector<8x128xf32>
    tpu.vector_store %arg12[%c48, %c0_36], %38 {strides = array<i32>} : memref<64x128xf32, #tpu.memory_space<vmem>>, vector<8x128xf32>,
    %c48_37 = arith.constant 48 : index
    %c0_38 = arith.constant 0 : index
    %40 = vector.load %arg11[%c48_37, %c0_38] : memref<64x256xf32, #tpu.memory_space<vmem>>, vector<8x128xf32>
    %41 = arith.truncf %38 : vector<8x128xf32> to vector<8x128xbf16>
    %cst_39 = arith.constant dense<0.000000e+00> : vector<8x128xf32>
    %42 = tpu.matmul %41, %7, %cst_39 {dimension_numbers = #tpu.dot_dimension_numbers<[1], [0], [0], [1], [0, 0, 1, 1], [], []>} : vector<8x128xbf16>, vector<128x128xbf16>, vector<8x128xf32> -> vector<8x128xf32>
    %43 = arith.addf %40, %42 : vector<8x128xf32>
    %c56 = arith.constant 56 : index
    %c0_40 = arith.constant 0 : index
    %44 = vector.load %arg12[%c56, %c0_40] : memref<64x128xf32, #tpu.memory_space<vmem>>, vector<8x128xf32>
    tpu.vector_store %arg12[%c56, %c0_40], %43 {strides = array<i32>} : memref<64x128xf32, #tpu.memory_space<vmem>>, vector<8x128xf32>,
    %c56_41 = arith.constant 56 : index
    %c0_42 = arith.constant 0 : index
    %45 = vector.load %arg11[%c56_41, %c0_42] : memref<64x256xf32, #tpu.memory_space<vmem>>, vector<8x128xf32>
    %46 = arith.truncf %43 : vector<8x128xf32> to vector<8x128xbf16>
    %cst_43 = arith.constant dense<0.000000e+00> : vector<8x128xf32>
    %47 = tpu.matmul %46, %7, %cst_43 {dimension_numbers = #tpu.dot_dimension_numbers<[1], [0], [0], [1], [0, 0, 1, 1], [], []>} : vector<8x128xbf16>, vector<128x128xbf16>, vector<8x128xf32> -> vector<8x128xf32>
    %48 = arith.addf %45, %47 : vector<8x128xf32>
    %49 = tpu.iota {dimensions = array<i32: 0>} : vector<8x1xi32>
    %c2_i32 = arith.constant 2 : i32
    %50 = vector.broadcast %c2_i32 : i32 to vector<8x1xi32>
    %51 = arith.cmpi slt, %49, %50 : vector<8x1xi32>
    %cst_44 = arith.constant 0.000000e+00 : f32
    %52 = vector.shape_cast %51 : vector<8x1xi1> to vector<8x1xi1>
    %53 = vector.broadcast %52 : vector<8x1xi1> to vector<8x128xi1>
    %54 = vector.broadcast %cst_44 : f32 to vector<8x128xf32>
    %55 = arith.select %53, %48, %54 : vector<8x128xi1>, vector<8x128xf32>
    %c0_45 = arith.constant 0 : index
    %c0_46 = arith.constant 0 : index
    %56 = vector.load %arg10[%c0_45, %c0_46] : memref<8x128xf32, #tpu.memory_space<vmem>>, vector<8x128xf32>
    tpu.vector_store %arg10[%c0_45, %c0_46], %55 {strides = array<i32>} : memref<8x128xf32, #tpu.memory_space<vmem>>, vector<8x128xf32>,
    %c0_47 = arith.constant 0 : index
    %c128 = arith.constant 128 : index
    %57 = vector.load %arg11[%c0_47, %c128] : memref<64x256xf32, #tpu.memory_space<vmem>>, vector<64x128xf32>
    %c0_48 = arith.constant 0 : index
    %c0_49 = arith.constant 0 : index
    %58 = vector.load %arg12[%c0_48, %c0_49] : memref<64x128xf32, #tpu.memory_space<vmem>>, vector<64x128xf32>
    %59 = arith.truncf %58 : vector<64x128xf32> to vector<64x128xbf16>
    %c0_50 = arith.constant 0 : index
    %c0_51 = arith.constant 0 : index
    %60 = vector.load %arg6[%c0_50, %c0_51] : memref<128x128xbf16, #tpu.memory_space<vmem>>, vector<128x128xbf16>
    %cst_52 = arith.constant dense<0.000000e+00> : vector<64x128xf32>
    %61 = tpu.matmul %59, %60, %cst_52 {dimension_numbers = #tpu.dot_dimension_numbers<[1], [0], [0], [1], [0, 0, 1, 1], [], []>} : vector<64x128xbf16>, vector<128x128xbf16>, vector<64x128xf32> -> vector<64x128xf32>
    %62 = arith.addf %57, %61 : vector<64x128xf32>
    %63 = arith.truncf %62 : vector<64x128xf32> to vector<64x128xbf16>
    %c0_53 = arith.constant 0 : index
    %c0_54 = arith.constant 0 : index
    %64 = vector.load %arg7[%c0_53, %c0_54] : memref<128x128xbf16, #tpu.memory_space<vmem>>, vector<128x128xbf16>
    %cst_55 = arith.constant dense<0.000000e+00> : vector<64x128xf32>
    %65 = tpu.matmul %63, %64, %cst_55 {dimension_numbers = #tpu.dot_dimension_numbers<[1], [0], [0], [1], [0, 0, 1, 1], [], []>} : vector<64x128xbf16>, vector<128x128xbf16>, vector<64x128xf32> -> vector<64x128xf32>
    %c0_56 = arith.constant 0 : index
    %c0_57 = arith.constant 0 : index
    %66 = vector.load %arg8[%c0_56, %c0_57] : memref<1x128xf32, #tpu.memory_space<vmem>>, vector<1x128xf32>
    %67 = vector.broadcast %66 : vector<1x128xf32> to vector<64x128xf32>
    %68 = arith.addf %65, %67 : vector<64x128xf32>
    %cst_58 = arith.constant dense<0xFF800000> : vector<64xf32>
    %69 = vector.multi_reduction <maximumf>, %68, %cst_58 [1] : vector<64x128xf32> to vector<64xf32>
    %70 = vector.shape_cast %69 : vector<64xf32> to vector<64x1xf32>
    %71 = vector.broadcast %70 : vector<64x1xf32> to vector<64x128xf32>
    %72 = arith.subf %68, %71 : vector<64x128xf32>
    %73 = math.exp %72 : vector<64x128xf32>
    %cst_59 = arith.constant dense<0.000000e+00> : vector<64xf32>
    %74 = vector.multi_reduction <add>, %73, %cst_59 [1] : vector<64x128xf32> to vector<64xf32>
    %75 = vector.shape_cast %74 : vector<64xf32> to vector<64x1xf32>
    %76 = math.log %75 : vector<64x1xf32>
    %77 = vector.broadcast %76 : vector<64x1xf32> to vector<64x128xf32>
    %78 = arith.subf %72, %77 : vector<64x128xf32>
    %c0_60 = arith.constant 0 : index
    %c0_61 = arith.constant 0 : index
    %79 = vector.load %arg9[%c0_60, %c0_61] : memref<64x128xf32, #tpu.memory_space<vmem>>, vector<64x128xf32>
    tpu.vector_store %arg9[%c0_60, %c0_61], %78 {strides = array<i32>} : memref<64x128xf32, #tpu.memory_space<vmem>>, vector<64x128xf32>,
    return
  }
  func.func @transform_0(%arg0: i32) -> (i32, i32) {
    %c0_i32 = arith.constant 0 : i32
    %c0_i32_0 = arith.constant 0 : i32
    %c0_i32_1 = arith.constant 0 : i32
    return %c0_i32, %c0_i32_0 : i32, i32
  }
  func.func @transform_1(%arg0: i32) -> (i32, i32) {
    %c0_i32 = arith.constant 0 : i32
    %c0_i32_0 = arith.constant 0 : i32
    %c0_i32_1 = arith.constant 0 : i32
    return %c0_i32, %c0_i32_0 : i32, i32
  }
  func.func @transform_2(%arg0: i32) -> (i32, i32) {
    %c0_i32 = arith.constant 0 : i32
    %c0_i32_0 = arith.constant 0 : i32
    %c0_i32_1 = arith.constant 0 : i32
    return %c0_i32, %c0_i32_0 : i32, i32
  }
  func.func @transform_3(%arg0: i32) -> (i32, i32) {
    %c0_i32 = arith.constant 0 : i32
    %c0_i32_0 = arith.constant 0 : i32
    %c0_i32_1 = arith.constant 0 : i32
    return %c0_i32, %c0_i32_0 : i32, i32
  }
  func.func @transform_4(%arg0: i32) -> (i32, i32) {
    %c0_i32 = arith.constant 0 : i32
    %c0_i32_0 = arith.constant 0 : i32
    %c0_i32_1 = arith.constant 0 : i32
    return %c0_i32, %c0_i32_0 : i32, i32
  }
  func.func @transform_5(%arg0: i32) -> (i32, i32) {
    %c0_i32 = arith.constant 0 : i32
    %c0_i32_0 = arith.constant 0 : i32
    %c0_i32_1 = arith.constant 0 : i32
    return %c0_i32, %c0_i32_0 : i32, i32
  }
  func.func @transform_6(%arg0: i32) -> (i32, i32) {
    %c0_i32 = arith.constant 0 : i32
    %c0_i32_0 = arith.constant 0 : i32
    %c0_i32_1 = arith.constant 0 : i32
    return %c0_i32, %c0_i32_0 : i32, i32
  }
  func.func @transform_7(%arg0: i32) -> (i32, i32) {
    %c0_i32 = arith.constant 0 : i32
    %c0_i32_0 = arith.constant 0 : i32
    %c0_i32_1 = arith.constant 0 : i32
    return %c0_i32, %c0_i32_0 : i32, i32
  }
  func.func @transform_8(%arg0: i32) -> (i32, i32) {
    %c0_i32 = arith.constant 0 : i32
    %c0_i32_0 = arith.constant 0 : i32
    %c0_i32_1 = arith.constant 0 : i32
    return %c0_i32, %c0_i32_0 : i32, i32
  }
  func.func @transform_9(%arg0: i32) -> (i32, i32) {
    %c0_i32 = arith.constant 0 : i32
    %c0_i32_0 = arith.constant 0 : i32
    %c0_i32_1 = arith.constant 0 : i32
    return %c0_i32, %c0_i32_0 : i32, i32
  }
}

</mosaic_0001>

<llo_original>
// kernel: tpu_custom_call.1
$region0: #{tpu_custom_call.1}
  #allocation0 [shape = 'u32[]', space=smem, size = 0x4, offset = 0x4, fixed_abs, tag = 'smem constant byte address 0x4 - core index']
  #allocation1 [shape = 'u32[144,128]{1,0:T(1,128)}', space=vmem, size = 0x12000, scoped, tag = 'internal scratch']
  #allocation2 [shape = 'f32[64,256]{1,0:T(8,128)}', space=vmem, size = 0x10000, scoped, tag = 'scratch operand']
  #allocation3 [shape = 'f32[64,128]{1,0:T(8,128)}', space=vmem, size = 0x8000, scoped, tag = 'scratch operand']
  %s0 = inlined_call_operand.hbm [shape: bf16[64,128], index: 0, kind: input, shape index: {}]
  %s1 = inlined_call_operand.hbm [shape: f32[8,128], index: 1, kind: input, shape index: {}]
  %s2 = inlined_call_operand.hbm [shape: bf16[128,256], index: 2, kind: input, shape index: {}]
  %s3 = inlined_call_operand.vmem [shape: f32[1,256], index: 3, kind: input, shape index: {}]
  %s4 = inlined_call_operand.hbm [shape: bf16[128,128], index: 4, kind: input, shape index: {}]
  %s5 = inlined_call_operand.hbm [shape: bf16[128,128], index: 5, kind: input, shape index: {}]
  %s6 = inlined_call_operand.hbm [shape: bf16[128,128], index: 6, kind: input, shape index: {}]
  %s7 = inlined_call_operand.vmem [shape: f32[1,128], index: 7, kind: input, shape index: {}]
  %s8 = inlined_call_operand.hbm [shape: f32[64,128], index: 8, kind: output, shape index: {0}]
  %s9 = inlined_call_operand.hbm [shape: f32[8,128], index: 9, kind: output, shape index: {1}]
  %10 = xla_tuple %s8, %s9
  %s11 = sld [smem:[#allocation0]]
  $region74: #{tpu_custom_call.1} parent=0
    _
  %s13 = ssub.s32 1, %s11
  %s14 = scalar_select 0, %s13, %s11
  $region1: #{tpu_custom_call.1} parent=0
    #allocation4 [shape = 'u8[16384]{0}', space=vmem, size = 0x4000, scoped, tag = 'input window, operand 0, single buffered']
    #allocation5 [shape = 's32[1]{0}', space=sflag, size = 0x4, scoped, tag = 'scoped memory for tpu_custom_call.1']
    #allocation6 [shape = 's32[1]{0}', space=sflag, size = 0x4, scoped, tag = 'scoped memory for tpu_custom_call.1']
    #allocation7 [shape = 'u8[4096]{0}', space=vmem, size = 0x1000, scoped, tag = 'input window, operand 1, single buffered']
    #allocation8 [shape = 's32[1]{0}', space=sflag, size = 0x4, scoped, tag = 'scoped memory for tpu_custom_call.1']
    #allocation9 [shape = 'u8[65536]{0}', space=vmem, size = 0x10000, scoped, tag = 'input window, operand 2, single buffered']
    #allocation10 [shape = 'u8[32768]{0}', space=vmem, size = 0x8000, scoped, tag = 'input window, operand 4, single buffered']
    #allocation11 [shape = 's32[1]{0}', space=sflag, size = 0x4, scoped, tag = 'scoped memory for tpu_custom_call.1']
    #allocation12 [shape = 'u8[32768]{0}', space=vmem, size = 0x8000, scoped, tag = 'input window, operand 5, single buffered']
    #allocation13 [shape = 'u8[32768]{0}', space=vmem, size = 0x8000, scoped, tag = 'input window, operand 6, single buffered']
    #allocation14 [shape = 's32[1]{0}', space=sflag, size = 0x4, scoped, tag = 'scoped memory for tpu_custom_call.1']
    #allocation15 [shape = 'u8[32768]{0}', space=vmem, size = 0x8000, scoped, tag = 'output window, operand 0, single buffered']
    #allocation16 [shape = 'u8[4096]{0}', space=vmem, size = 0x1000, scoped, tag = 'output window, operand 1, single buffered']
    #allocation17 [shape = 's32[1]{0}', space=sflag, size = 0x4, scoped, tag = 'scoped memory for tpu_custom_call.1']
    %15 = vsyncpa [#allocation5], 0
    %16 = vsyncpa [#allocation8], 0
    %17 = vsyncpa [#allocation11], 0
    %18 = vsyncpa [#allocation14], 0
    %19 = vsyncpa [#allocation6], 0
    %20 = vsyncpa [#allocation17], 0
    // Predicated region
    $region2: #{tpu_custom_call.1} parent=1 // pred_check
      _
    $region3: #{tpu_custom_call.1} parent=1 // pred_check_branch
      %22 = sbr.rel (0) target = $region5
    $region4: #{tpu_custom_call.1} parent=1 // pred_region
      %s24 = ssub.s32 512, 512
      %25 = vsyncadd [#allocation5], %s24
      %s26 = sshll.u32 [#allocation4], 4
      %s27 = int_to_ptr.vmem [resolvable:$true] %s26
      %32 = dma.hbm_to_vmem [thread:$0]  %s0, 512, %s27, [#allocation5], 64, 64, 4
    $region5: #{tpu_custom_call.1} parent=1 // pred_fallthru
      _
    // Predicated region
    $region6: #{tpu_custom_call.1} parent=1 // pred_check
      _
    $region7: #{tpu_custom_call.1} parent=1 // pred_check_branch
      %34 = sbr.rel (0) target = $region9
    $region8: #{tpu_custom_call.1} parent=1 // pred_region
      %s36 = ssub.s32 128, 128
      %37 = vsyncadd [#allocation8], %s36
      %s39 = sshll.u32 [#allocation7], 4
      %s40 = int_to_ptr.vmem [resolvable:$true] %s39
      %42 = dma.hbm_to_vmem [thread:$0]  %s1, 128, %s40, [#allocation8]
    $region9: #{tpu_custom_call.1} parent=1 // pred_fallthru
      _
    // Predicated region
    $region10: #{tpu_custom_call.1} parent=1 // pred_check
      _
    $region11: #{tpu_custom_call.1} parent=1 // pred_check_branch
      %44 = sbr.rel (0) target = $region13
    $region12: #{tpu_custom_call.1} parent=1 // pred_region
      %s46 = ssub.s32 2048, 2048
      %47 = vsyncadd [#allocation8], %s46
      %s48 = sshll.u32 [#allocation9], 4
      %s49 = int_to_ptr.vmem [resolvable:$true] %s48
      %54 = dma.hbm_to_vmem [thread:$0]  %s2, 2048, %s49, [#allocation8], 128, 128, 8
    $region13: #{tpu_custom_call.1} parent=1 // pred_fallthru
      _
    // Predicated region
    $region14: #{tpu_custom_call.1} parent=1 // pred_check
      _
    $region15: #{tpu_custom_call.1} parent=1 // pred_check_branch
      %56 = sbr.rel (0) target = $region17
    $region16: #{tpu_custom_call.1} parent=1 // pred_region
      _
    $region17: #{tpu_custom_call.1} parent=1 // pred_fallthru
      _
    // Predicated region
    $region18: #{tpu_custom_call.1} parent=1 // pred_check
      _
    $region19: #{tpu_custom_call.1} parent=1 // pred_check_branch
      %58 = sbr.rel (0) target = $region21
    $region20: #{tpu_custom_call.1} parent=1 // pred_region
      %s60 = ssub.s32 1024, 1024
      %61 = vsyncadd [#allocation11], %s60
      %s62 = sshll.u32 [#allocation10], 4
      %s63 = int_to_ptr.vmem [resolvable:$true] %s62
      %68 = dma.hbm_to_vmem [thread:$0]  %s4, 1024, %s63, [#allocation11], 64, 64, 4
    $region21: #{tpu_custom_call.1} parent=1 // pred_fallthru
      _
    // Predicated region
    $region22: #{tpu_custom_call.1} parent=1 // pred_check
      _
    $region23: #{tpu_custom_call.1} parent=1 // pred_check_branch
      %70 = sbr.rel (0) target = $region25
    $region24: #{tpu_custom_call.1} parent=1 // pred_region
      %s72 = ssub.s32 1024, 1024
      %73 = vsyncadd [#allocation11], %s72
      %s74 = sshll.u32 [#allocation12], 4
      %s75 = int_to_ptr.vmem [resolvable:$true] %s74
      %80 = dma.hbm_to_vmem [thread:$0]  %s5, 1024, %s75, [#allocation11], 64, 64, 4
    $region25: #{tpu_custom_call.1} parent=1 // pred_fallthru
      _
    // Predicated region
    $region26: #{tpu_custom_call.1} parent=1 // pred_check
      _
    $region27: #{tpu_custom_call.1} parent=1 // pred_check_branch
      %82 = sbr.rel (0) target = $region29
    $region28: #{tpu_custom_call.1} parent=1 // pred_region
      %s84 = ssub.s32 1024, 1024
      %85 = vsyncadd [#allocation14], %s84
      %s86 = sshll.u32 [#allocation13], 4
      %s87 = int_to_ptr.vmem [resolvable:$true] %s86
      %92 = dma.hbm_to_vmem [thread:$0]  %s6, 1024, %s87, [#allocation14], 64, 64, 4
    $region29: #{tpu_custom_call.1} parent=1 // pred_fallthru
      _
    // Predicated region
    $region30: #{tpu_custom_call.1} parent=1 // pred_check
      _
    $region31: #{tpu_custom_call.1} parent=1 // pred_check_branch
      %94 = sbr.rel (0) target = $region33
    $region32: #{tpu_custom_call.1} parent=1 // pred_region
      _
    $region33: #{tpu_custom_call.1} parent=1 // pred_fallthru
      _
    // Predicated region
    $region34: #{tpu_custom_call.1} parent=1 // pred_check
      _
    $region35: #{tpu_custom_call.1} parent=1 // pred_check_branch
      %96 = sbr.rel (0) target = $region37
    $region36: #{tpu_custom_call.1} parent=1 // pred_region
      %97 = dma.done [#allocation5], 512
    $region37: #{tpu_custom_call.1} parent=1 // pred_fallthru
      _
    // Predicated region
    $region38: #{tpu_custom_call.1} parent=1 // pred_check
      _
    $region39: #{tpu_custom_call.1} parent=1 // pred_check_branch
      %99 = sbr.rel (0) target = $region41
    $region40: #{tpu_custom_call.1} parent=1 // pred_region
      %100 = dma.done [#allocation8], 128
    $region41: #{tpu_custom_call.1} parent=1 // pred_fallthru
      _
    // Predicated region
    $region42: #{tpu_custom_call.1} parent=1 // pred_check
      _
    $region43: #{tpu_custom_call.1} parent=1 // pred_check_branch
      %102 = sbr.rel (0) target = $region45
    $region44: #{tpu_custom_call.1} parent=1 // pred_region
      %103 = dma.done [#allocation8], 2048
    $region45: #{tpu_custom_call.1} parent=1 // pred_fallthru
      _
    // Predicated region
    $region46: #{tpu_custom_call.1} parent=1 // pred_check
      _
    $region47: #{tpu_custom_call.1} parent=1 // pred_check_branch
      %105 = sbr.rel (0) target = $region49
    $region48: #{tpu_custom_call.1} parent=1 // pred_region
      %106 = dma.done [#allocation11], 1024
    $region49: #{tpu_custom_call.1} parent=1 // pred_fallthru
      _
    // Predicated region
    $region50: #{tpu_custom_call.1} parent=1 // pred_check
      _
    $region51: #{tpu_custom_call.1} parent=1 // pred_check_branch
      %108 = sbr.rel (0) target = $region53
    $region52: #{tpu_custom_call.1} parent=1 // pred_region
      %109 = dma.done [#allocation11], 1024
    $region53: #{tpu_custom_call.1} parent=1 // pred_fallthru
      _
    // Predicated region
    $region54: #{tpu_custom_call.1} parent=1 // pred_check
      _
    $region55: #{tpu_custom_call.1} parent=1 // pred_check_branch
      %111 = sbr.rel (0) target = $region57
    $region56: #{tpu_custom_call.1} parent=1 // pred_region
      %112 = dma.done [#allocation14], 1024
    $region57: #{tpu_custom_call.1} parent=1 // pred_fallthru
      _
    %v114 = vld [vmem:[#allocation4] sm:$0xf]
    %v115 = vld [vmem:[#allocation4 + $0x4] sm:$0xf]
    %v116 = vld [vmem:[#allocation4 + $0x8] sm:$0xf]
    %v117 = vld [vmem:[#allocation4 + $0xc] sm:$0xf]
    %v118 = vld [vmem:[#allocation4 + $0x10] sm:$0xf]
    %v119 = vld [vmem:[#allocation4 + $0x14] sm:$0xf]
    %v120 = vld [vmem:[#allocation4 + $0x18] sm:$0xf]
    %v121 = vld [vmem:[#allocation4 + $0x1c] sm:$0xf]
    %v122 = vld [vmem:[#allocation9] sm:$0xff]
    %v123 = vld [vmem:[#allocation9 + $0x8] sm:$0xff]
    %v124 = vld [vmem:[#allocation9 + $0x10] sm:$0xff]
    %v125 = vld [vmem:[#allocation9 + $0x18] sm:$0xff]
    %v126 = vld [vmem:[#allocation9 + $0x20] sm:$0xff]
    %v127 = vld [vmem:[#allocation9 + $0x28] sm:$0xff]
    %v128 = vld [vmem:[#allocation9 + $0x30] sm:$0xff]
    %v129 = vld [vmem:[#allocation9 + $0x38] sm:$0xff]
    %v130 = vld [vmem:[#allocation9 + $0x40] sm:$0xff]
    %v131 = vld [vmem:[#allocation9 + $0x48] sm:$0xff]
    %v132 = vld [vmem:[#allocation9 + $0x50] sm:$0xff]
    %v133 = vld [vmem:[#allocation9 + $0x58] sm:$0xff]
    %v134 = vld [vmem:[#allocation9 + $0x60] sm:$0xff]
    %v135 = vld [vmem:[#allocation9 + $0x68] sm:$0xff]
    %v136 = vld [vmem:[#allocation9 + $0x70] sm:$0xff]
    %v137 = vld [vmem:[#allocation9 + $0x78] sm:$0xff]
    %v138 = vld [vmem:[%s3] sm:$0x3]
    %v140 = vlaneseq
    %v141 = vshrl.u32 %v140, 7
    %v142 = vsub.s32 0, %v141
    %v143 = vrot.slane %v138, %v142
    %v144 = vlaneseq
    %v145 = vshrl.u32 %v144, 7
    %v146 = vsub.s32 1, %v145
    %v147 = vrot.slane %v138, %v146
    %v158 = vunpack.c.l.b16 %v114
    %v159 = vunpack.c.l.b16 %v115
    %v160 = vunpack.c.l.b16 %v116
    %v161 = vunpack.c.l.b16 %v117
    %v162 = vunpack.c.l.b16 %v118
    %v163 = vunpack.c.l.b16 %v119
    %v164 = vunpack.c.l.b16 %v120
    %v165 = vunpack.c.l.b16 %v121
    %v166 = vpack.c.b16 %v159, %v158
    %v167 = vpack.c.b16 %v161, %v160
    %v168 = vpack.c.b16 %v163, %v162
    %v169 = vpack.c.b16 %v165, %v164
    %v190 = vunpack.c.l.b16 %v122
    %v191 = vunpack.c.h.b16 %v122
    %v192 = vunpack.c.l.b16 %v123
    %v193 = vunpack.c.h.b16 %v123
    %v194 = vunpack.c.l.b16 %v124
    %v195 = vunpack.c.h.b16 %v124
    %v196 = vunpack.c.l.b16 %v125
    %v197 = vunpack.c.h.b16 %v125
    %v198 = vunpack.c.l.b16 %v126
    %v199 = vunpack.c.h.b16 %v126
    %v200 = vunpack.c.l.b16 %v127
    %v201 = vunpack.c.h.b16 %v127
    %v202 = vunpack.c.l.b16 %v128
    %v203 = vunpack.c.h.b16 %v128
    %v204 = vunpack.c.l.b16 %v129
    %v205 = vunpack.c.h.b16 %v129
    %v206 = vunpack.c.l.b16 %v130
    %v207 = vunpack.c.h.b16 %v130
    %v208 = vunpack.c.l.b16 %v131
    %v209 = vunpack.c.h.b16 %v131
    %v210 = vunpack.c.l.b16 %v132
    %v211 = vunpack.c.h.b16 %v132
    %v212 = vunpack.c.l.b16 %v133
    %v213 = vunpack.c.h.b16 %v133
    %v214 = vunpack.c.l.b16 %v134
    %v215 = vunpack.c.h.b16 %v134
    %v216 = vunpack.c.l.b16 %v135
    %v217 = vunpack.c.h.b16 %v135
    %v218 = vunpack.c.l.b16 %v136
    %v219 = vunpack.c.h.b16 %v136
    %v220 = vunpack.c.l.b16 %v137
    %v221 = vunpack.c.h.b16 %v137
    %v222 = vpack.c.b16 %v192, %v190
    %v223 = vpack.c.b16 %v193, %v191
    %v224 = vpack.c.b16 %v196, %v194
    %v225 = vpack.c.b16 %v197, %v195
    %v226 = vpack.c.b16 %v200, %v198
    %v227 = vpack.c.b16 %v201, %v199
    %v228 = vpack.c.b16 %v204, %v202
    %v229 = vpack.c.b16 %v205, %v203
    %v230 = vpack.c.b16 %v208, %v206
    %v231 = vpack.c.b16 %v209, %v207
    %v232 = vpack.c.b16 %v212, %v210
    %v233 = vpack.c.b16 %v213, %v211
    %v234 = vpack.c.b16 %v216, %v214
    %v235 = vpack.c.b16 %v217, %v215
    %v236 = vpack.c.b16 %v220, %v218
    %v237 = vpack.c.b16 %v221, %v219
    %254 = vmatprep.subr.bf16.mxu0 %v223
    %255 = vmatpush1.bf16.msra.mxu0 %v222
    %256 = vmatprep.subr.bf16.mxu0 %v225
    %257 = vmatpush1.bf16.msra.mxu0 %v224
    %258 = vmatprep.subr.bf16.mxu0 %v227
    %259 = vmatpush1.bf16.msra.mxu0 %v226
    %260 = vmatprep.subr.bf16.mxu0 %v229
    %261 = vmatpush1.bf16.msra.mxu0 %v228
    %262 = vmatprep.subr.bf16.mxu0 %v231
    %263 = vmatpush1.bf16.msra.mxu0 %v230
    %264 = vmatprep.subr.bf16.mxu0 %v233
    %265 = vmatpush1.bf16.msra.mxu0 %v232
    %266 = vmatprep.subr.bf16.mxu0 %v235
    %267 = vmatpush1.bf16.msra.mxu0 %v234
    %268 = vmatprep.subr.bf16.mxu0 %v237
    %269 = vmatpush1.bf16.msra.mxu0 %v236
    %270 = vmatprep.subr.bf16.mxu0 0
    %271 = vmatpush1.bf16.msra.mxu0 0
    %272 = vmatprep.subr.bf16.mxu0 0
    %273 = vmatpush1.bf16.msra.mxu0 0
    %274 = vmatprep.subr.bf16.mxu0 0
    %275 = vmatpush1.bf16.msra.mxu0 0
    %276 = vmatprep.subr.bf16.mxu0 0
    %277 = vmatpush1.bf16.msra.mxu0 0
    %278 = vmatprep.subr.bf16.mxu0 0
    %279 = vmatpush1.bf16.msra.mxu0 0
    %280 = vmatprep.subr.bf16.mxu0 0
    %281 = vmatpush1.bf16.msra.mxu0 0
    %282 = vmatprep.subr.bf16.mxu0 0
    %283 = vmatpush1.bf16.msra.mxu0 0
    %284 = vmatprep.subr.bf16.mxu0 0
    %285 = vmatpush1.bf16.msra.mxu0 0
    %286 = vmatprep.mubr.bf16.mxu0 0
    %287 = vmatmul.mubr.bf16.gmra.mrb[0].mxu0 %v166
    %v288 = vpop.f32.mrb[0].mxu0
    %v289 = vadd.f32 %v143, %v288
    %v290 = vpop.f32.mrb[0].mxu0
    %v291 = vadd.f32 %v147, %v290
    %v292 = vpop.f32.mrb[0].mxu0
    %v293 = vadd.f32 %v143, %v292
    %v294 = vpop.f32.mrb[0].mxu0
    %v295 = vadd.f32 %v147, %v294
    %296 = vmatprep.mubr.bf16.mxu0 0
    %297 = vmatmul.mubr.bf16.gmra.mrb[0].mxu0 %v167
    %v298 = vpop.f32.mrb[0].mxu0
    %v299 = vadd.f32 %v143, %v298
    %v300 = vpop.f32.mrb[0].mxu0
    %v301 = vadd.f32 %v147, %v300
    %v302 = vpop.f32.mrb[0].mxu0
    %v303 = vadd.f32 %v143, %v302
    %v304 = vpop.f32.mrb[0].mxu0
    %v305 = vadd.f32 %v147, %v304
    %306 = vmatprep.mubr.bf16.mxu0 0
    %307 = vmatmul.mubr.bf16.gmra.mrb[0].mxu0 %v168
    %v308 = vpop.f32.mrb[0].mxu0
    %v309 = vadd.f32 %v143, %v308
    %v310 = vpop.f32.mrb[0].mxu0
    %v311 = vadd.f32 %v147, %v310
    %v312 = vpop.f32.mrb[0].mxu0
    %v313 = vadd.f32 %v143, %v312
    %v314 = vpop.f32.mrb[0].mxu0
    %v315 = vadd.f32 %v147, %v314
    %316 = vmatprep.mubr.bf16.mxu0 0
    %317 = vmatmul.mubr.bf16.gmra.mrb[0].mxu0 %v169
    %v318 = vpop.f32.mrb[0].mxu0
    %v319 = vadd.f32 %v143, %v318
    %v320 = vpop.f32.mrb[0].mxu0
    %v321 = vadd.f32 %v147, %v320
    %v322 = vpop.f32.mrb[0].mxu0
    %v323 = vadd.f32 %v143, %v322
    %v324 = vpop.f32.mrb[0].mxu0
    %v325 = vadd.f32 %v147, %v324
    %326 = vdwg.mxu0
    %327 = vst [vmem:[#allocation2] sm:$0xff] %v289
    %328 = vst [vmem:[#allocation2 + $0x8] sm:$0xff] %v291
    %329 = vst [vmem:[#allocation2 + $0x10] sm:$0xff] %v293
    %330 = vst [vmem:[#allocation2 + $0x18] sm:$0xff] %v295
    %331 = vst [vmem:[#allocation2 + $0x20] sm:$0xff] %v299
    %332 = vst [vmem:[#allocation2 + $0x28] sm:$0xff] %v301
    %333 = vst [vmem:[#allocation2 + $0x30] sm:$0xff] %v303
    %334 = vst [vmem:[#allocation2 + $0x38] sm:$0xff] %v305
    %335 = vst [vmem:[#allocation2 + $0x40] sm:$0xff] %v309
    %336 = vst [vmem:[#allocation2 + $0x48] sm:$0xff] %v311
    %337 = vst [vmem:[#allocation2 + $0x50] sm:$0xff] %v313
    %338 = vst [vmem:[#allocation2 + $0x58] sm:$0xff] %v315
    %339 = vst [vmem:[#allocation2 + $0x60] sm:$0xff] %v319
    %340 = vst [vmem:[#allocation2 + $0x68] sm:$0xff] %v321
    %341 = vst [vmem:[#allocation2 + $0x70] sm:$0xff] %v323
    %342 = vst [vmem:[#allocation2 + $0x78] sm:$0xff] %v325
    %v343 = vld [vmem:[#allocation10] sm:$0xf]
    %v344 = vld [vmem:[#allocation10 + $0x4] sm:$0xf]
    %v345 = vld [vmem:[#allocation10 + $0x8] sm:$0xf]
    %v346 = vld [vmem:[#allocation10 + $0xc] sm:$0xf]
    %v347 = vld [vmem:[#allocation10 + $0x10] sm:$0xf]
    %v348 = vld [vmem:[#allocation10 + $0x14] sm:$0xf]
    %v349 = vld [vmem:[#allocation10 + $0x18] sm:$0xf]
    %v350 = vld [vmem:[#allocation10 + $0x1c] sm:$0xf]
    %v351 = vld [vmem:[#allocation10 + $0x20] sm:$0xf]
    %v352 = vld [vmem:[#allocation10 + $0x24] sm:$0xf]
    %v353 = vld [vmem:[#allocation10 + $0x28] sm:$0xf]
    %v354 = vld [vmem:[#allocation10 + $0x2c] sm:$0xf]
    %v355 = vld [vmem:[#allocation10 + $0x30] sm:$0xf]
    %v356 = vld [vmem:[#allocation10 + $0x34] sm:$0xf]
    %v357 = vld [vmem:[#allocation10 + $0x38] sm:$0xf]
    %v358 = vld [vmem:[#allocation10 + $0x3c] sm:$0xf]
    %v359 = vld [vmem:[#allocation7] sm:$0xff]
    %360 = vst [vmem:[#allocation3] sm:$0xff] %v359
    %v361 = vld [vmem:[#allocation2] sm:$0xff]
    %v362 = vpack.c.bf16 %v359, %v359
    %v379 = vunpack.c.l.b16 %v343
    %v380 = vunpack.c.l.b16 %v344
    %v381 = vunpack.c.l.b16 %v345
    %v382 = vunpack.c.l.b16 %v346
    %v383 = vunpack.c.l.b16 %v347
    %v384 = vunpack.c.l.b16 %v348
    %v385 = vunpack.c.l.b16 %v349
    %v386 = vunpack.c.l.b16 %v350
    %v387 = vunpack.c.l.b16 %v351
    %v388 = vunpack.c.l.b16 %v352
    %v389 = vunpack.c.l.b16 %v353
    %v390 = vunpack.c.l.b16 %v354
    %v391 = vunpack.c.l.b16 %v355
    %v392 = vunpack.c.l.b16 %v356
    %v393 = vunpack.c.l.b16 %v357
    %v394 = vunpack.c.l.b16 %v358
    %v395 = vpack.c.b16 %v380, %v379
    %v396 = vpack.c.b16 %v382, %v381
    %v397 = vpack.c.b16 %v384, %v383
    %v398 = vpack.c.b16 %v386, %v385
    %v399 = vpack.c.b16 %v388, %v387
    %v400 = vpack.c.b16 %v390, %v389
    %v401 = vpack.c.b16 %v392, %v391
    %v402 = vpack.c.b16 %v394, %v393
    %411 = vmatprep.subr.bf16.mxu0 0
    %412 = vmatpush1.bf16.msra.mxu0 %v395
    %413 = vmatprep.subr.bf16.mxu0 0
    %414 = vmatpush1.bf16.msra.mxu0 %v396
    %415 = vmatprep.subr.bf16.mxu0 0
    %416 = vmatpush1.bf16.msra.mxu0 %v397
    %417 = vmatprep.subr.bf16.mxu0 0
    %418 = vmatpush1.bf16.msra.mxu0 %v398
    %419 = vmatprep.subr.bf16.mxu0 0
    %420 = vmatpush1.bf16.msra.mxu0 %v399
    %421 = vmatprep.subr.bf16.mxu0 0
    %422 = vmatpush1.bf16.msra.mxu0 %v400
    %423 = vmatprep.subr.bf16.mxu0 0
    %424 = vmatpush1.bf16.msra.mxu0 %v401
    %425 = vmatprep.subr.bf16.mxu0 0
    %426 = vmatpush1.bf16.msra.mxu0 %v402
    %427 = vmatprep.subr.bf16.mxu0 0
    %428 = vmatpush1.bf16.msra.mxu0 0
    %429 = vmatprep.subr.bf16.mxu0 0
    %430 = vmatpush1.bf16.msra.mxu0 0
    %431 = vmatprep.subr.bf16.mxu0 0
    %432 = vmatpush1.bf16.msra.mxu0 0
    %433 = vmatprep.subr.bf16.mxu0 0
    %434 = vmatpush1.bf16.msra.mxu0 0
    %435 = vmatprep.subr.bf16.mxu0 0
    %436 = vmatpush1.bf16.msra.mxu0 0
    %437 = vmatprep.subr.bf16.mxu0 0
    %438 = vmatpush1.bf16.msra.mxu0 0
    %439 = vmatprep.subr.bf16.mxu0 0
    %440 = vmatpush1.bf16.msra.mxu0 0
    %441 = vmatprep.subr.bf16.mxu0 0
    %442 = vmatpush1.bf16.msra.mxu0 0
    %443 = vmatprep.mubr.bf16.mxu0 0
    %444 = vmatmul.mubr.bf16.gmra.mrb[0].mxu0 %v362
    %v445 = vpop.f32.mrb[0].mxu0
    %v446 = vadd.f32 0.0, %v445
    %v447 = vpop.f32.mrb[0].mxu0
    %v448 = vpop.f32.mrb[0].mxu0
    %v449 = vpop.f32.mrb[0].mxu0
    %450 = vdwg.mxu0
    %v451 = vadd.f32 %v361, %v446
    %452 = vst [vmem:[#allocation3 + $0x8] sm:$0xff] %v451
    %v453 = vld [vmem:[#allocation2 + $0x10] sm:$0xff]
    %v454 = vpack.c.bf16 %v451, %v451
    %455 = vmatprep.subr.bf16.mxu0 0
    %456 = vmatpush1.bf16.msra.mxu0 %v395
    %457 = vmatprep.subr.bf16.mxu0 0
    %458 = vmatpush1.bf16.msra.mxu0 %v396
    %459 = vmatprep.subr.bf16.mxu0 0
    %460 = vmatpush1.bf16.msra.mxu0 %v397
    %461 = vmatprep.subr.bf16.mxu0 0
    %462 = vmatpush1.bf16.msra.mxu0 %v398
    %463 = vmatprep.subr.bf16.mxu0 0
    %464 = vmatpush1.bf16.msra.mxu0 %v399
    %465 = vmatprep.subr.bf16.mxu0 0
    %466 = vmatpush1.bf16.msra.mxu0 %v400
    %467 = vmatprep.subr.bf16.mxu0 0
    %468 = vmatpush1.bf16.msra.mxu0 %v401
    %469 = vmatprep.subr.bf16.mxu0 0
    %470 = vmatpush1.bf16.msra.mxu0 %v402
    %471 = vmatprep.subr.bf16.mxu0 0
    %472 = vmatpush1.bf16.msra.mxu0 0
    %473 = vmatprep.subr.bf16.mxu0 0
    %474 = vmatpush1.bf16.msra.mxu0 0
    %475 = vmatprep.subr.bf16.mxu0 0
    %476 = vmatpush1.bf16.msra.mxu0 0
    %477 = vmatprep.subr.bf16.mxu0 0
    %478 = vmatpush1.bf16.msra.mxu0 0
    %479 = vmatprep.subr.bf16.mxu0 0
    %480 = vmatpush1.bf16.msra.mxu0 0
    %481 = vmatprep.subr.bf16.mxu0 0
    %482 = vmatpush1.bf16.msra.mxu0 0
    %483 = vmatprep.subr.bf16.mxu0 0
    %484 = vmatpush1.bf16.msra.mxu0 0
    %485 = vmatprep.subr.bf16.mxu0 0
    %486 = vmatpush1.bf16.msra.mxu0 0
    %487 = vmatprep.mubr.bf16.mxu0 0
    %488 = vmatmul.mubr.bf16.gmra.mrb[0].mxu0 %v454
    %v489 = vpop.f32.mrb[0].mxu0
    %v490 = vadd.f32 0.0, %v489
    %v491 = vpop.f32.mrb[0].mxu0
    %v492 = vpop.f32.mrb[0].mxu0
    %v493 = vpop.f32.mrb[0].mxu0
    %494 = vdwg.mxu0
    %v495 = vadd.f32 %v453, %v490
    %496 = vst [vmem:[#allocation3 + $0x10] sm:$0xff] %v495
    %v497 = vld [vmem:[#allocation2 + $0x20] sm:$0xff]
    %v498 = vpack.c.bf16 %v495, %v495
    %499 = vmatprep.subr.bf16.mxu0 0
    %500 = vmatpush1.bf16.msra.mxu0 %v395
    %501 = vmatprep.subr.bf16.mxu0 0
    %502 = vmatpush1.bf16.msra.mxu0 %v396
    %503 = vmatprep.subr.bf16.mxu0 0
    %504 = vmatpush1.bf16.msra.mxu0 %v397
    %505 = vmatprep.subr.bf16.mxu0 0
    %506 = vmatpush1.bf16.msra.mxu0 %v398
    %507 = vmatprep.subr.bf16.mxu0 0
    %508 = vmatpush1.bf16.msra.mxu0 %v399
    %509 = vmatprep.subr.bf16.mxu0 0
    %510 = vmatpush1.bf16.msra.mxu0 %v400
    %511 = vmatprep.subr.bf16.mxu0 0
    %512 = vmatpush1.bf16.msra.mxu0 %v401
    %513 = vmatprep.subr.bf16.mxu0 0
    %514 = vmatpush1.bf16.msra.mxu0 %v402
    %515 = vmatprep.subr.bf16.mxu0 0
    %516 = vmatpush1.bf16.msra.mxu0 0
    %517 = vmatprep.subr.bf16.mxu0 0
    %518 = vmatpush1.bf16.msra.mxu0 0
    %519 = vmatprep.subr.bf16.mxu0 0
    %520 = vmatpush1.bf16.msra.mxu0 0
    %521 = vmatprep.subr.bf16.mxu0 0
    %522 = vmatpush1.bf16.msra.mxu0 0
    %523 = vmatprep.subr.bf16.mxu0 0
    %524 = vmatpush1.bf16.msra.mxu0 0
    %525 = vmatprep.subr.bf16.mxu0 0
    %526 = vmatpush1.bf16.msra.mxu0 0
    %527 = vmatprep.subr.bf16.mxu0 0
    %528 = vmatpush1.bf16.msra.mxu0 0
    %529 = vmatprep.subr.bf16.mxu0 0
    %530 = vmatpush1.bf16.msra.mxu0 0
    %531 = vmatprep.mubr.bf16.mxu0 0
    %532 = vmatmul.mubr.bf16.gmra.mrb[0].mxu0 %v498
    %v533 = vpop.f32.mrb[0].mxu0
    %v534 = vadd.f32 0.0, %v533
    %v535 = vpop.f32.mrb[0].mxu0
    %v536 = vpop.f32.mrb[0].mxu0
    %v537 = vpop.f32.mrb[0].mxu0
    %538 = vdwg.mxu0
    %v539 = vadd.f32 %v497, %v534
    %540 = vst [vmem:[#allocation3 + $0x18] sm:$0xff] %v539
    %v541 = vld [vmem:[#allocation2 + $0x30] sm:$0xff]
    %v542 = vpack.c.bf16 %v539, %v539
    %543 = vmatprep.subr.bf16.mxu0 0
    %544 = vmatpush1.bf16.msra.mxu0 %v395
    %545 = vmatprep.subr.bf16.mxu0 0
    %546 = vmatpush1.bf16.msra.mxu0 %v396
    %547 = vmatprep.subr.bf16.mxu0 0
    %548 = vmatpush1.bf16.msra.mxu0 %v397
    %549 = vmatprep.subr.bf16.mxu0 0
    %550 = vmatpush1.bf16.msra.mxu0 %v398
    %551 = vmatprep.subr.bf16.mxu0 0
    %552 = vmatpush1.bf16.msra.mxu0 %v399
    %553 = vmatprep.subr.bf16.mxu0 0
    %554 = vmatpush1.bf16.msra.mxu0 %v400
    %555 = vmatprep.subr.bf16.mxu0 0
    %556 = vmatpush1.bf16.msra.mxu0 %v401
    %557 = vmatprep.subr.bf16.mxu0 0
    %558 = vmatpush1.bf16.msra.mxu0 %v402
    %559 = vmatprep.subr.bf16.mxu0 0
    %560 = vmatpush1.bf16.msra.mxu0 0
    %561 = vmatprep.subr.bf16.mxu0 0
    %562 = vmatpush1.bf16.msra.mxu0 0
    %563 = vmatprep.subr.bf16.mxu0 0
    %564 = vmatpush1.bf16.msra.mxu0 0
    %565 = vmatprep.subr.bf16.mxu0 0
    %566 = vmatpush1.bf16.msra.mxu0 0
    %567 = vmatprep.subr.bf16.mxu0 0
    %568 = vmatpush1.bf16.msra.mxu0 0
    %569 = vmatprep.subr.bf16.mxu0 0
    %570 = vmatpush1.bf16.msra.mxu0 0
    %571 = vmatprep.subr.bf16.mxu0 0
    %572 = vmatpush1.bf16.msra.mxu0 0
    %573 = vmatprep.subr.bf16.mxu0 0
    %574 = vmatpush1.bf16.msra.mxu0 0
    %575 = vmatprep.mubr.bf16.mxu0 0
    %576 = vmatmul.mubr.bf16.gmra.mrb[0].mxu0 %v542
    %v577 = vpop.f32.mrb[0].mxu0
    %v578 = vadd.f32 0.0, %v577
    %v579 = vpop.f32.mrb[0].mxu0
    %v580 = vpop.f32.mrb[0].mxu0
    %v581 = vpop.f32.mrb[0].mxu0
    %582 = vdwg.mxu0
    %v583 = vadd.f32 %v541, %v578
    %584 = vst [vmem:[#allocation3 + $0x20] sm:$0xff] %v583
    %v585 = vld [vmem:[#allocation2 + $0x40] sm:$0xff]
    %v586 = vpack.c.bf16 %v583, %v583
    %587 = vmatprep.subr.bf16.mxu0 0
    %588 = vmatpush1.bf16.msra.mxu0 %v395
    %589 = vmatprep.subr.bf16.mxu0 0
    %590 = vmatpush1.bf16.msra.mxu0 %v396
    %591 = vmatprep.subr.bf16.mxu0 0
    %592 = vmatpush1.bf16.msra.mxu0 %v397
    %593 = vmatprep.subr.bf16.mxu0 0
    %594 = vmatpush1.bf16.msra.mxu0 %v398
    %595 = vmatprep.subr.bf16.mxu0 0
    %596 = vmatpush1.bf16.msra.mxu0 %v399
    %597 = vmatprep.subr.bf16.mxu0 0
    %598 = vmatpush1.bf16.msra.mxu0 %v400
    %599 = vmatprep.subr.bf16.mxu0 0
    %600 = vmatpush1.bf16.msra.mxu0 %v401
    %601 = vmatprep.subr.bf16.mxu0 0
    %602 = vmatpush1.bf16.msra.mxu0 %v402
    %603 = vmatprep.subr.bf16.mxu0 0
    %604 = vmatpush1.bf16.msra.mxu0 0
    %605 = vmatprep.subr.bf16.mxu0 0
    %606 = vmatpush1.bf16.msra.mxu0 0
    %607 = vmatprep.subr.bf16.mxu0 0
    %608 = vmatpush1.bf16.msra.mxu0 0
    %609 = vmatprep.subr.bf16.mxu0 0
    %610 = vmatpush1.bf16.msra.mxu0 0
    %611 = vmatprep.subr.bf16.mxu0 0
    %612 = vmatpush1.bf16.msra.mxu0 0
    %613 = vmatprep.subr.bf16.mxu0 0
    %614 = vmatpush1.bf16.msra.mxu0 0
    %615 = vmatprep.subr.bf16.mxu0 0
    %616 = vmatpush1.bf16.msra.mxu0 0
    %617 = vmatprep.subr.bf16.mxu0 0
    %618 = vmatpush1.bf16.msra.mxu0 0
    %619 = vmatprep.mubr.bf16.mxu0 0
    %620 = vmatmul.mubr.bf16.gmra.mrb[0].mxu0 %v586
    %v621 = vpop.f32.mrb[0].mxu0
    %v622 = vadd.f32 0.0, %v621
    %v623 = vpop.f32.mrb[0].mxu0
    %v624 = vpop.f32.mrb[0].mxu0
    %v625 = vpop.f32.mrb[0].mxu0
    %626 = vdwg.mxu0
    %v627 = vadd.f32 %v585, %v622
    %628 = vst [vmem:[#allocation3 + $0x28] sm:$0xff] %v627
    %v629 = vld [vmem:[#allocation2 + $0x50] sm:$0xff]
    %v630 = vpack.c.bf16 %v627, %v627
    %631 = vmatprep.subr.bf16.mxu0 0
    %632 = vmatpush1.bf16.msra.mxu0 %v395
    %633 = vmatprep.subr.bf16.mxu0 0
    %634 = vmatpush1.bf16.msra.mxu0 %v396
    %635 = vmatprep.subr.bf16.mxu0 0
    %636 = vmatpush1.bf16.msra.mxu0 %v397
    %637 = vmatprep.subr.bf16.mxu0 0
    %638 = vmatpush1.bf16.msra.mxu0 %v398
    %639 = vmatprep.subr.bf16.mxu0 0
    %640 = vmatpush1.bf16.msra.mxu0 %v399
    %641 = vmatprep.subr.bf16.mxu0 0
    %642 = vmatpush1.bf16.msra.mxu0 %v400
    %643 = vmatprep.subr.bf16.mxu0 0
    %644 = vmatpush1.bf16.msra.mxu0 %v401
    %645 = vmatprep.subr.bf16.mxu0 0
    %646 = vmatpush1.bf16.msra.mxu0 %v402
    %647 = vmatprep.subr.bf16.mxu0 0
    %648 = vmatpush1.bf16.msra.mxu0 0
    %649 = vmatprep.subr.bf16.mxu0 0
    %650 = vmatpush1.bf16.msra.mxu0 0
    %651 = vmatprep.subr.bf16.mxu0 0
    %652 = vmatpush1.bf16.msra.mxu0 0
    %653 = vmatprep.subr.bf16.mxu0 0
    %654 = vmatpush1.bf16.msra.mxu0 0
    %655 = vmatprep.subr.bf16.mxu0 0
    %656 = vmatpush1.bf16.msra.mxu0 0
    %657 = vmatprep.subr.bf16.mxu0 0
    %658 = vmatpush1.bf16.msra.mxu0 0
    %659 = vmatprep.subr.bf16.mxu0 0
    %660 = vmatpush1.bf16.msra.mxu0 0
    %661 = vmatprep.subr.bf16.mxu0 0
    %662 = vmatpush1.bf16.msra.mxu0 0
    %663 = vmatprep.mubr.bf16.mxu0 0
    %664 = vmatmul.mubr.bf16.gmra.mrb[0].mxu0 %v630
    %v665 = vpop.f32.mrb[0].mxu0
    %v666 = vadd.f32 0.0, %v665
    %v667 = vpop.f32.mrb[0].mxu0
    %v668 = vpop.f32.mrb[0].mxu0
    %v669 = vpop.f32.mrb[0].mxu0
    %670 = vdwg.mxu0
    %v671 = vadd.f32 %v629, %v666
    %672 = vst [vmem:[#allocation3 + $0x30] sm:$0xff] %v671
    %v673 = vld [vmem:[#allocation2 + $0x60] sm:$0xff]
    %v674 = vpack.c.bf16 %v671, %v671
    %675 = vmatprep.subr.bf16.mxu0 0
    %676 = vmatpush1.bf16.msra.mxu0 %v395
    %677 = vmatprep.subr.bf16.mxu0 0
    %678 = vmatpush1.bf16.msra.mxu0 %v396
    %679 = vmatprep.subr.bf16.mxu0 0
    %680 = vmatpush1.bf16.msra.mxu0 %v397
    %681 = vmatprep.subr.bf16.mxu0 0
    %682 = vmatpush1.bf16.msra.mxu0 %v398
    %683 = vmatprep.subr.bf16.mxu0 0
    %684 = vmatpush1.bf16.msra.mxu0 %v399
    %685 = vmatprep.subr.bf16.mxu0 0
    %686 = vmatpush1.bf16.msra.mxu0 %v400
    %687 = vmatprep.subr.bf16.mxu0 0
    %688 = vmatpush1.bf16.msra.mxu0 %v401
    %689 = vmatprep.subr.bf16.mxu0 0
    %690 = vmatpush1.bf16.msra.mxu0 %v402
    %691 = vmatprep.subr.bf16.mxu0 0
    %692 = vmatpush1.bf16.msra.mxu0 0
    %693 = vmatprep.subr.bf16.mxu0 0
    %694 = vmatpush1.bf16.msra.mxu0 0
    %695 = vmatprep.subr.bf16.mxu0 0
    %696 = vmatpush1.bf16.msra.mxu0 0
    %697 = vmatprep.subr.bf16.mxu0 0
    %698 = vmatpush1.bf16.msra.mxu0 0
    %699 = vmatprep.subr.bf16.mxu0 0
    %700 = vmatpush1.bf16.msra.mxu0 0
    %701 = vmatprep.subr.bf16.mxu0 0
    %702 = vmatpush1.bf16.msra.mxu0 0
    %703 = vmatprep.subr.bf16.mxu0 0
    %704 = vmatpush1.bf16.msra.mxu0 0
    %705 = vmatprep.subr.bf16.mxu0 0
    %706 = vmatpush1.bf16.msra.mxu0 0
    %707 = vmatprep.mubr.bf16.mxu0 0
    %708 = vmatmul.mubr.bf16.gmra.mrb[0].mxu0 %v674
    %v709 = vpop.f32.mrb[0].mxu0
    %v710 = vadd.f32 0.0, %v709
    %v711 = vpop.f32.mrb[0].mxu0
    %v712 = vpop.f32.mrb[0].mxu0
    %v713 = vpop.f32.mrb[0].mxu0
    %714 = vdwg.mxu0
    %v715 = vadd.f32 %v673, %v710
    %716 = vst [vmem:[#allocation3 + $0x38] sm:$0xff] %v715
    %v717 = vld [vmem:[#allocation2 + $0x70] sm:$0xff]
    %v718 = vpack.c.bf16 %v715, %v715
    %719 = vmatprep.subr.bf16.mxu0 0
    %720 = vmatpush1.bf16.msra.mxu0 %v395
    %721 = vmatprep.subr.bf16.mxu0 0
    %722 = vmatpush1.bf16.msra.mxu0 %v396
    %723 = vmatprep.subr.bf16.mxu0 0
    %724 = vmatpush1.bf16.msra.mxu0 %v397
    %725 = vmatprep.subr.bf16.mxu0 0
    %726 = vmatpush1.bf16.msra.mxu0 %v398
    %727 = vmatprep.subr.bf16.mxu0 0
    %728 = vmatpush1.bf16.msra.mxu0 %v399
    %729 = vmatprep.subr.bf16.mxu0 0
    %730 = vmatpush1.bf16.msra.mxu0 %v400
    %731 = vmatprep.subr.bf16.mxu0 0
    %732 = vmatpush1.bf16.msra.mxu0 %v401
    %733 = vmatprep.subr.bf16.mxu0 0
    %734 = vmatpush1.bf16.msra.mxu0 %v402
    %735 = vmatprep.subr.bf16.mxu0 0
    %736 = vmatpush1.bf16.msra.mxu0 0
    %737 = vmatprep.subr.bf16.mxu0 0
    %738 = vmatpush1.bf16.msra.mxu0 0
    %739 = vmatprep.subr.bf16.mxu0 0
    %740 = vmatpush1.bf16.msra.mxu0 0
    %741 = vmatprep.subr.bf16.mxu0 0
    %742 = vmatpush1.bf16.msra.mxu0 0
    %743 = vmatprep.subr.bf16.mxu0 0
    %744 = vmatpush1.bf16.msra.mxu0 0
    %745 = vmatprep.subr.bf16.mxu0 0
    %746 = vmatpush1.bf16.msra.mxu0 0
    %747 = vmatprep.subr.bf16.mxu0 0
    %748 = vmatpush1.bf16.msra.mxu0 0
    %749 = vmatprep.subr.bf16.mxu0 0
    %750 = vmatpush1.bf16.msra.mxu0 0
    %751 = vmatprep.mubr.bf16.mxu0 0
    %752 = vmatmul.mubr.bf16.gmra.mrb[0].mxu0 %v718
    %v753 = vpop.f32.mrb[0].mxu0
    %v754 = vadd.f32 0.0, %v753
    %v755 = vpop.f32.mrb[0].mxu0
    %v756 = vpop.f32.mrb[0].mxu0
    %v757 = vpop.f32.mrb[0].mxu0
    %758 = vdwg.mxu0
    %v759 = vadd.f32 %v717, %v754
    %v760 = vlaneseq
    %v761 = vshrl.u32 %v760, 7
    %vm762 = vcmp.lt.s32.totalorder %v761, 2
    %v763 = vsel %vm762, 1, 0
    %vm764 = vcmp.eq.s32.totalorder %v763, 1
    %v765 = vsel %vm764, %v759, 0.0
    %766 = vst [vmem:[#allocation16] sm:$0xff] %v765
    %v767 = vld [vmem:[#allocation2 + $0x8] sm:$0xff]
    %v768 = vld [vmem:[#allocation2 + $0x18] sm:$0xff]
    %v769 = vld [vmem:[#allocation2 + $0x28] sm:$0xff]
    %v770 = vld [vmem:[#allocation2 + $0x38] sm:$0xff]
    %v771 = vld [vmem:[#allocation2 + $0x48] sm:$0xff]
    %v772 = vld [vmem:[#allocation2 + $0x58] sm:$0xff]
    %v773 = vld [vmem:[#allocation2 + $0x68] sm:$0xff]
    %v774 = vld [vmem:[#allocation2 + $0x78] sm:$0xff]
    %v775 = vld [vmem:[#allocation3] sm:$0xff]
    %v776 = vld [vmem:[#allocation3 + $0x8] sm:$0xff]
    %v777 = vld [vmem:[#allocation3 + $0x10] sm:$0xff]
    %v778 = vld [vmem:[#allocation3 + $0x18] sm:$0xff]
    %v779 = vld [vmem:[#allocation3 + $0x20] sm:$0xff]
    %v780 = vld [vmem:[#allocation3 + $0x28] sm:$0xff]
    %v781 = vld [vmem:[#allocation3 + $0x30] sm:$0xff]
    %v782 = vld [vmem:[#allocation3 + $0x38] sm:$0xff]
    %v783 = vpack.c.bf16 %v776, %v775
    %v784 = vpack.c.bf16 %v778, %v777
    %v785 = vpack.c.bf16 %v780, %v779
    %v786 = vpack.c.bf16 %v782, %v781
    %v787 = vld [vmem:[#allocation12] sm:$0xf]
    %v788 = vld [vmem:[#allocation12 + $0x4] sm:$0xf]
    %v789 = vld [vmem:[#allocation12 + $0x8] sm:$0xf]
    %v790 = vld [vmem:[#allocation12 + $0xc] sm:$0xf]
    %v791 = vld [vmem:[#allocation12 + $0x10] sm:$0xf]
    %v792 = vld [vmem:[#allocation12 + $0x14] sm:$0xf]
    %v793 = vld [vmem:[#allocation12 + $0x18] sm:$0xf]
    %v794 = vld [vmem:[#allocation12 + $0x1c] sm:$0xf]
    %v795 = vld [vmem:[#allocation12 + $0x20] sm:$0xf]
    %v796 = vld [vmem:[#allocation12 + $0x24] sm:$0xf]
    %v797 = vld [vmem:[#allocation12 + $0x28] sm:$0xf]
    %v798 = vld [vmem:[#allocation12 + $0x2c] sm:$0xf]
    %v799 = vld [vmem:[#allocation12 + $0x30] sm:$0xf]
    %v800 = vld [vmem:[#allocation12 + $0x34] sm:$0xf]
    %v801 = vld [vmem:[#allocation12 + $0x38] sm:$0xf]
    %v802 = vld [vmem:[#allocation12 + $0x3c] sm:$0xf]
    %v819 = vunpack.c.l.b16 %v787
    %v820 = vunpack.c.l.b16 %v788
    %v821 = vunpack.c.l.b16 %v789
    %v822 = vunpack.c.l.b16 %v790
    %v823 = vunpack.c.l.b16 %v791
    %v824 = vunpack.c.l.b16 %v792
    %v825 = vunpack.c.l.b16 %v793
    %v826 = vunpack.c.l.b16 %v794
    %v827 = vunpack.c.l.b16 %v795
    %v828 = vunpack.c.l.b16 %v796
    %v829 = vunpack.c.l.b16 %v797
    %v830 = vunpack.c.l.b16 %v798
    %v831 = vunpack.c.l.b16 %v799
    %v832 = vunpack.c.l.b16 %v800
    %v833 = vunpack.c.l.b16 %v801
    %v834 = vunpack.c.l.b16 %v802
    %v835 = vpack.c.b16 %v820, %v819
    %v836 = vpack.c.b16 %v822, %v821
    %v837 = vpack.c.b16 %v824, %v823
    %v838 = vpack.c.b16 %v826, %v825
    %v839 = vpack.c.b16 %v828, %v827
    %v840 = vpack.c.b16 %v830, %v829
    %v841 = vpack.c.b16 %v832, %v831
    %v842 = vpack.c.b16 %v834, %v833
    %851 = vmatprep.subr.bf16.mxu0 0
    %852 = vmatpush1.bf16.msra.mxu0 %v835
    %853 = vmatprep.subr.bf16.mxu0 0
    %854 = vmatpush1.bf16.msra.mxu0 %v836
    %855 = vmatprep.subr.bf16.mxu0 0
    %856 = vmatpush1.bf16.msra.mxu0 %v837
    %857 = vmatprep.subr.bf16.mxu0 0
    %858 = vmatpush1.bf16.msra.mxu0 %v838
    %859 = vmatprep.subr.bf16.mxu0 0
    %860 = vmatpush1.bf16.msra.mxu0 %v839
    %861 = vmatprep.subr.bf16.mxu0 0
    %862 = vmatpush1.bf16.msra.mxu0 %v840
    %863 = vmatprep.subr.bf16.mxu0 0
    %864 = vmatpush1.bf16.msra.mxu0 %v841
    %865 = vmatprep.subr.bf16.mxu0 0
    %866 = vmatpush1.bf16.msra.mxu0 %v842
    %867 = vmatprep.subr.bf16.mxu0 0
    %868 = vmatpush1.bf16.msra.mxu0 0
    %869 = vmatprep.subr.bf16.mxu0 0
    %870 = vmatpush1.bf16.msra.mxu0 0
    %871 = vmatprep.subr.bf16.mxu0 0
    %872 = vmatpush1.bf16.msra.mxu0 0
    %873 = vmatprep.subr.bf16.mxu0 0
    %874 = vmatpush1.bf16.msra.mxu0 0
    %875 = vmatprep.subr.bf16.mxu0 0
    %876 = vmatpush1.bf16.msra.mxu0 0
    %877 = vmatprep.subr.bf16.mxu0 0
    %878 = vmatpush1.bf16.msra.mxu0 0
    %879 = vmatprep.subr.bf16.mxu0 0
    %880 = vmatpush1.bf16.msra.mxu0 0
    %881 = vmatprep.subr.bf16.mxu0 0
    %882 = vmatpush1.bf16.msra.mxu0 0
    %883 = vmatprep.mubr.bf16.mxu0 0
    %884 = vmatmul.mubr.bf16.gmra.mrb[0].mxu0 %v783
    %v885 = vpop.f32.mrb[0].mxu0
    %v886 = vadd.f32 0.0, %v885
    %v887 = vpop.f32.mrb[0].mxu0
    %v888 = vpop.f32.mrb[0].mxu0
    %v889 = vadd.f32 0.0, %v888
    %v890 = vpop.f32.mrb[0].mxu0
    %891 = vmatprep.mubr.bf16.mxu0 0
    %892 = vmatmul.mubr.bf16.gmra.mrb[0].mxu0 %v784
    %v893 = vpop.f32.mrb[0].mxu0
    %v894 = vadd.f32 0.0, %v893
    %v895 = vpop.f32.mrb[0].mxu0
    %v896 = vpop.f32.mrb[0].mxu0
    %v897 = vadd.f32 0.0, %v896
    %v898 = vpop.f32.mrb[0].mxu0
    %899 = vmatprep.mubr.bf16.mxu0 0
    %900 = vmatmul.mubr.bf16.gmra.mrb[0].mxu0 %v785
    %v901 = vpop.f32.mrb[0].mxu0
    %v902 = vadd.f32 0.0, %v901
    %v903 = vpop.f32.mrb[0].mxu0
    %v904 = vpop.f32.mrb[0].mxu0
    %v905 = vadd.f32 0.0, %v904
    %v906 = vpop.f32.mrb[0].mxu0
    %907 = vmatprep.mubr.bf16.mxu0 0
    %908 = vmatmul.mubr.bf16.gmra.mrb[0].mxu0 %v786
    %v909 = vpop.f32.mrb[0].mxu0
    %v910 = vadd.f32 0.0, %v909
    %v911 = vpop.f32.mrb[0].mxu0
    %v912 = vpop.f32.mrb[0].mxu0
    %v913 = vadd.f32 0.0, %v912
    %v914 = vpop.f32.mrb[0].mxu0
    %915 = vdwg.mxu0
    %v916 = vadd.f32 %v767, %v886
    %v917 = vadd.f32 %v768, %v889
    %v918 = vadd.f32 %v769, %v894
    %v919 = vadd.f32 %v770, %v897
    %v920 = vadd.f32 %v771, %v902
    %v921 = vadd.f32 %v772, %v905
    %v922 = vadd.f32 %v773, %v910
    %v923 = vadd.f32 %v774, %v913
    %v924 = vpack.c.bf16 %v917, %v916
    %v925 = vpack.c.bf16 %v919, %v918
    %v926 = vpack.c.bf16 %v921, %v920
    %v927 = vpack.c.bf16 %v923, %v922
    %v928 = vld [vmem:[#allocation13] sm:$0xf]
    %v929 = vld [vmem:[#allocation13 + $0x4] sm:$0xf]
    %v930 = vld [vmem:[#allocation13 + $0x8] sm:$0xf]
    %v931 = vld [vmem:[#allocation13 + $0xc] sm:$0xf]
    %v932 = vld [vmem:[#allocation13 + $0x10] sm:$0xf]
    %v933 = vld [vmem:[#allocation13 + $0x14] sm:$0xf]
    %v934 = vld [vmem:[#allocation13 + $0x18] sm:$0xf]
    %v935 = vld [vmem:[#allocation13 + $0x1c] sm:$0xf]
    %v936 = vld [vmem:[#allocation13 + $0x20] sm:$0xf]
    %v937 = vld [vmem:[#allocation13 + $0x24] sm:$0xf]
    %v938 = vld [vmem:[#allocation13 + $0x28] sm:$0xf]
    %v939 = vld [vmem:[#allocation13 + $0x2c] sm:$0xf]
    %v940 = vld [vmem:[#allocation13 + $0x30] sm:$0xf]
    %v941 = vld [vmem:[#allocation13 + $0x34] sm:$0xf]
    %v942 = vld [vmem:[#allocation13 + $0x38] sm:$0xf]
    %v943 = vld [vmem:[#allocation13 + $0x3c] sm:$0xf]
    %v944 = vld [vmem:[%s7] sm:$0x1]
    %v946 = vlaneseq
    %v947 = vshrl.u32 %v946, 7
    %v948 = vsub.s32 0, %v947
    %v949 = vrot.slane %v944, %v948
    %v967 = vunpack.c.l.b16 %v928
    %v968 = vunpack.c.l.b16 %v929
    %v969 = vunpack.c.l.b16 %v930
    %v970 = vunpack.c.l.b16 %v931
    %v971 = vunpack.c.l.b16 %v932
    %v972 = vunpack.c.l.b16 %v933
    %v973 = vunpack.c.l.b16 %v934
    %v974 = vunpack.c.l.b16 %v935
    %v975 = vunpack.c.l.b16 %v936
    %v976 = vunpack.c.l.b16 %v937
    %v977 = vunpack.c.l.b16 %v938
    %v978 = vunpack.c.l.b16 %v939
    %v979 = vunpack.c.l.b16 %v940
    %v980 = vunpack.c.l.b16 %v941
    %v981 = vunpack.c.l.b16 %v942
    %v982 = vunpack.c.l.b16 %v943
    %v983 = vpack.c.b16 %v968, %v967
    %v984 = vpack.c.b16 %v970, %v969
    %v985 = vpack.c.b16 %v972, %v971
    %v986 = vpack.c.b16 %v974, %v973
    %v987 = vpack.c.b16 %v976, %v975
    %v988 = vpack.c.b16 %v978, %v977
    %v989 = vpack.c.b16 %v980, %v979
    %v990 = vpack.c.b16 %v982, %v981
    %999 = vmatprep.subr.bf16.mxu0 0
    %1000 = vmatpush1.bf16.msra.mxu0 %v983
    %1001 = vmatprep.subr.bf16.mxu0 0
    %1002 = vmatpush1.bf16.msra.mxu0 %v984
    %1003 = vmatprep.subr.bf16.mxu0 0
    %1004 = vmatpush1.bf16.msra.mxu0 %v985
    %1005 = vmatprep.subr.bf16.mxu0 0
    %1006 = vmatpush1.bf16.msra.mxu0 %v986
    %1007 = vmatprep.subr.bf16.mxu0 0
    %1008 = vmatpush1.bf16.msra.mxu0 %v987
    %1009 = vmatprep.subr.bf16.mxu0 0
    %1010 = vmatpush1.bf16.msra.mxu0 %v988
    %1011 = vmatprep.subr.bf16.mxu0 0
    %1012 = vmatpush1.bf16.msra.mxu0 %v989
    %1013 = vmatprep.subr.bf16.mxu0 0
    %1014 = vmatpush1.bf16.msra.mxu0 %v990
    %1015 = vmatprep.subr.bf16.mxu0 0
    %1016 = vmatpush1.bf16.msra.mxu0 0
    %1017 = vmatprep.subr.bf16.mxu0 0
    %1018 = vmatpush1.bf16.msra.mxu0 0
    %1019 = vmatprep.subr.bf16.mxu0 0
    %1020 = vmatpush1.bf16.msra.mxu0 0
    %1021 = vmatprep.subr.bf16.mxu0 0
    %1022 = vmatpush1.bf16.msra.mxu0 0
    %1023 = vmatprep.subr.bf16.mxu0 0
    %1024 = vmatpush1.bf16.msra.mxu0 0
    %1025 = vmatprep.subr.bf16.mxu0 0
    %1026 = vmatpush1.bf16.msra.mxu0 0
    %1027 = vmatprep.subr.bf16.mxu0 0
    %1028 = vmatpush1.bf16.msra.mxu0 0
    %1029 = vmatprep.subr.bf16.mxu0 0
    %1030 = vmatpush1.bf16.msra.mxu0 0
    %1031 = vmatprep.mubr.bf16.mxu0 0
    %1032 = vmatmul.mubr.bf16.gmra.mrb[0].mxu0 %v924
    %v1033 = vpop.f32.mrb[0].mxu0
    %v1034 = vadd.f32 %v949, %v1033
    %v1035 = vpop.f32.mrb[0].mxu0
    %v1036 = vpop.f32.mrb[0].mxu0
    %v1037 = vadd.f32 %v949, %v1036
    %v1038 = vpop.f32.mrb[0].mxu0
    %1039 = vmatprep.mubr.bf16.mxu0 0
    %1040 = vmatmul.mubr.bf16.gmra.mrb[0].mxu0 %v925
    %v1041 = vpop.f32.mrb[0].mxu0
    %v1042 = vadd.f32 %v949, %v1041
    %v1043 = vpop.f32.mrb[0].mxu0
    %v1044 = vpop.f32.mrb[0].mxu0
    %v1045 = vadd.f32 %v949, %v1044
    %v1046 = vpop.f32.mrb[0].mxu0
    %1047 = vmatprep.mubr.bf16.mxu0 0
    %1048 = vmatmul.mubr.bf16.gmra.mrb[0].mxu0 %v926
    %v1049 = vpop.f32.mrb[0].mxu0
    %v1050 = vadd.f32 %v949, %v1049
    %v1051 = vpop.f32.mrb[0].mxu0
    %v1052 = vpop.f32.mrb[0].mxu0
    %v1053 = vadd.f32 %v949, %v1052
    %v1054 = vpop.f32.mrb[0].mxu0
    %1055 = vmatprep.mubr.bf16.mxu0 0
    %1056 = vmatmul.mubr.bf16.gmra.mrb[0].mxu0 %v927
    %v1057 = vpop.f32.mrb[0].mxu0
    %v1058 = vadd.f32 %v949, %v1057
    %v1059 = vpop.f32.mrb[0].mxu0
    %v1060 = vpop.f32.mrb[0].mxu0
    %v1061 = vadd.f32 %v949, %v1060
    %v1062 = vpop.f32.mrb[0].mxu0
    %1063 = vdwg.mxu0
    %1064 = vmax.xlane.f32.xlu0 %v1034
    %v1065 = vpop.xlane.xlu0 %1064
    %1066 = vmax.xlane.f32.xlu0 %v1037
    %v1067 = vpop.xlane.xlu0 %1066
    %1068 = vmax.xlane.f32.xlu0 %v1042
    %v1069 = vpop.xlane.xlu0 %1068
    %1070 = vmax.xlane.f32.xlu0 %v1045
    %v1071 = vpop.xlane.xlu0 %1070
    %1072 = vmax.xlane.f32.xlu0 %v1050
    %v1073 = vpop.xlane.xlu0 %1072
    %1074 = vmax.xlane.f32.xlu0 %v1053
    %v1075 = vpop.xlane.xlu0 %1074
    %1076 = vmax.xlane.f32.xlu0 %v1058
    %v1077 = vpop.xlane.xlu0 %1076
    %1078 = vmax.xlane.f32.xlu0 %v1061
    %v1079 = vpop.xlane.xlu0 %1078
    %v1080 = vsub.f32 %v1034, %v1065
    %v1081 = vsub.f32 %v1037, %v1067
    %v1082 = vsub.f32 %v1042, %v1069
    %v1083 = vsub.f32 %v1045, %v1071
    %v1084 = vsub.f32 %v1050, %v1073
    %v1085 = vsub.f32 %v1053, %v1075
    %v1086 = vsub.f32 %v1058, %v1077
    %v1087 = vsub.f32 %v1061, %v1079
    %v1088 = vmul.f32 %v1080, 1.442695
    %v1089 = vpow.pop %v1088
    %v1090 = vmul.f32 %v1081, 1.442695
    %v1091 = vpow.pop %v1090
    %v1092 = vmul.f32 %v1082, 1.442695
    %v1093 = vpow.pop %v1092
    %v1094 = vmul.f32 %v1083, 1.442695
    %v1095 = vpow.pop %v1094
    %v1096 = vmul.f32 %v1084, 1.442695
    %v1097 = vpow.pop %v1096
    %v1098 = vmul.f32 %v1085, 1.442695
    %v1099 = vpow.pop %v1098
    %v1100 = vmul.f32 %v1086, 1.442695
    %v1101 = vpow.pop %v1100
    %v1102 = vmul.f32 %v1087, 1.442695
    %v1103 = vpow.pop %v1102
    %1104 = vadd.xlane.f32.xlu0 %v1089
    %v1105 = vpop.xlane.xlu0 %1104
    %1106 = vadd.xlane.f32.xlu0 %v1091
    %v1107 = vpop.xlane.xlu0 %1106
    %1108 = vadd.xlane.f32.xlu0 %v1093
    %v1109 = vpop.xlane.xlu0 %1108
    %1110 = vadd.xlane.f32.xlu0 %v1095
    %v1111 = vpop.xlane.xlu0 %1110
    %1112 = vadd.xlane.f32.xlu0 %v1097
    %v1113 = vpop.xlane.xlu0 %1112
    %1114 = vadd.xlane.f32.xlu0 %v1099
    %v1115 = vpop.xlane.xlu0 %1114
    %1116 = vadd.xlane.f32.xlu0 %v1101
    %v1117 = vpop.xlane.xlu0 %1116
    %1118 = vadd.xlane.f32.xlu0 %v1103
    %v1119 = vpop.xlane.xlu0 %1118
    %v1120 = vlog2.pop %v1105
    %v1121 = vmul.f32 %v1120, 0.6931472
    %v1122 = vlog2.pop %v1107
    %v1123 = vmul.f32 %v1122, 0.6931472
    %v1124 = vlog2.pop %v1109
    %v1125 = vmul.f32 %v1124, 0.6931472
    %v1126 = vlog2.pop %v1111
    %v1127 = vmul.f32 %v1126, 0.6931472
    %v1128 = vlog2.pop %v1113
    %v1129 = vmul.f32 %v1128, 0.6931472
    %v1130 = vlog2.pop %v1115
    %v1131 = vmul.f32 %v1130, 0.6931472
    %v1132 = vlog2.pop %v1117
    %v1133 = vmul.f32 %v1132, 0.6931472
    %v1134 = vlog2.pop %v1119
    %v1135 = vmul.f32 %v1134, 0.6931472
    %v1136 = vsub.f32 %v1080, %v1121
    %v1137 = vsub.f32 %v1081, %v1123
    %v1138 = vsub.f32 %v1082, %v1125
    %v1139 = vsub.f32 %v1083, %v1127
    %v1140 = vsub.f32 %v1084, %v1129
    %v1141 = vsub.f32 %v1085, %v1131
    %v1142 = vsub.f32 %v1086, %v1133
    %v1143 = vsub.f32 %v1087, %v1135
    %1144 = vst [vmem:[#allocation15] sm:$0xff] %v1136
    %1145 = vst [vmem:[#allocation15 + $0x8] sm:$0xff] %v1137
    %1146 = vst [vmem:[#allocation15 + $0x10] sm:$0xff] %v1138
    %1147 = vst [vmem:[#allocation15 + $0x18] sm:$0xff] %v1139
    %1148 = vst [vmem:[#allocation15 + $0x20] sm:$0xff] %v1140
    %1149 = vst [vmem:[#allocation15 + $0x28] sm:$0xff] %v1141
    %1150 = vst [vmem:[#allocation15 + $0x30] sm:$0xff] %v1142
    %1151 = vst [vmem:[#allocation15 + $0x38] sm:$0xff] %v1143
    // Predicated region
    $region58: #{tpu_custom_call.1} parent=1 // pred_check
      _
    $region59: #{tpu_custom_call.1} parent=1 // pred_check_branch
      %1153 = sbr.rel (0) target = $region61
    $region60: #{tpu_custom_call.1} parent=1 // pred_region
      %s1155 = ssub.s32 1024, 1024
      %1156 = vsyncadd [#allocation6], %s1155
      %s1157 = sshll.u32 [#allocation15], 4
      %s1158 = int_to_ptr.vmem [resolvable:$true] %s1157
      %1163 = dma.vmem_to_hbm [thread:$0]  %s1158, 1024, %s8, [#allocation6], 128, 128, 8
    $region61: #{tpu_custom_call.1} parent=1 // pred_fallthru
      _
    // Predicated region
    $region62: #{tpu_custom_call.1} parent=1 // pred_check
      _
    $region63: #{tpu_custom_call.1} parent=1 // pred_check_branch
      %1165 = sbr.rel (0) target = $region65
    $region64: #{tpu_custom_call.1} parent=1 // pred_region
      %s1167 = ssub.s32 128, 128
      %1168 = vsyncadd [#allocation17], %s1167
      %s1170 = sshll.u32 [#allocation16], 4
      %s1171 = int_to_ptr.vmem [resolvable:$true] %s1170
      %1173 = dma.vmem_to_hbm [thread:$0]  %s1171, 128, %s9, [#allocation17]
    $region65: #{tpu_custom_call.1} parent=1 // pred_fallthru
      _
    // Predicated region
    $region66: #{tpu_custom_call.1} parent=1 // pred_check
      _
    $region67: #{tpu_custom_call.1} parent=1 // pred_check_branch
      %1175 = sbr.rel (0) target = $region69
    $region68: #{tpu_custom_call.1} parent=1 // pred_region
      %1176 = dma.done [#allocation6], 1024
    $region69: #{tpu_custom_call.1} parent=1 // pred_fallthru
      _
    // Predicated region
    $region70: #{tpu_custom_call.1} parent=1 // pred_check
      _
    $region71: #{tpu_custom_call.1} parent=1 // pred_check_branch
      %1178 = sbr.rel (0) target = $region73
    $region72: #{tpu_custom_call.1} parent=1 // pred_region
      %1179 = dma.done [#allocation17], 128
    $region73: #{tpu_custom_call.1} parent=1 // pred_fallthru
      _
    %1180 = vsyncpa [#allocation5], 1
    %1181 = vsyncpa [#allocation8], 1
    %1182 = vsyncpa [#allocation11], 1
    %1183 = vsyncpa [#allocation14], 1
    %1184 = vsyncpa [#allocation6], 1
    %1185 = vsyncpa [#allocation17], 1

</llo_original>
